<compile_context>
chip_gen: v5e
topology: v5e:2x2
jax: 0.10.0
libtpu: 0.0.40
codegen_flags: <defaults>
</compile_context>

<pallas_src>
import math
from functools import partial

import jax
import jax.numpy as jnp
from jax.experimental import pallas as pl
from jax.experimental.pallas import tpu as pltpu


def _mha_kernel(*refs, num_heads, with_mask, need_weights):
    # Static unpack (with_mask / need_weights are Python-time flags).
    x_ref, w_in_t_ref, b_in_ref, w_out_h_ref, b_out_ref = refs[:5]
    i = 5
    mb_ref = None
    if with_mask:
        mb_ref = refs[i]
        i += 1
    val_ref = refs[i]
    i += 1
    attn_ref = refs[i] if need_weights else None

    _, N, C = x_ref.shape
    H = num_heads
    hd = C // H
    scale = 1.0 / math.sqrt(hd)

    # ---- Fused QKV projection: one bf16 (N,C)x(C,3C) MXU matmul, f32 accumulation ----
    x = x_ref[0].astype(jnp.bfloat16)                                   # (N, C)
    qkv = jnp.dot(x, w_in_t_ref[...], preferred_element_type=jnp.float32)
    qkv = qkv + b_in_ref[...]                                           # (N, 3C) f32

    q = qkv[:, :C] * scale          # fold 1/sqrt(hd) into q: N*C mults instead of H*N*N
    k = qkv[:, C:2 * C]
    v = qkv[:, 2 * C:]

    # ---- Heads-leading layout (H, N, hd): lane-slices stacked on a new leading axis ----
    qh = jnp.stack([q[:, h * hd:(h + 1) * hd] for h in range(H)], axis=0).astype(jnp.bfloat16)
    kh = jnp.stack([k[:, h * hd:(h + 1) * hd] for h in range(H)], axis=0).astype(jnp.bfloat16)
    vh = jnp.stack([v[:, h * hd:(h + 1) * hd] for h in range(H)], axis=0).astype(jnp.bfloat16)

    # ---- Batched scores + softmax (elementwise math stays in f32) ----
    s = jnp.einsum("hnd,hmd->hnm", qh, kh, preferred_element_type=jnp.float32)  # (H, N, N)
    if with_mask:
        # Additive key-padding bias (-inf on masked keys). NOTE: a fully-masked row
        # yields NaN, matching PyTorch's behavior for an all-True key_padding row.
        s = s + mb_ref[0]                                               # (1, N) broadcast
    s = s - jnp.max(s, axis=-1, keepdims=True)
    p = jnp.exp(s)
    p = p * pl.reciprocal(jnp.sum(p, axis=-1, keepdims=True), approx=True)  # EUP slot

    if need_weights:
        # PyTorch default average_attn_weights=True.
        attn_ref[0] = (jnp.sum(p, axis=0) * (1.0 / H)).astype(attn_ref.dtype)

    # ---- Context + output projection (heads-batched, then summed over heads) ----
    ctx = jnp.einsum("hnm,hmd->hnd", p.astype(jnp.bfloat16), vh,
                     preferred_element_type=jnp.float32)                # (H, N, hd)
    out_h = jnp.einsum("hnd,hdc->hnc", ctx.astype(jnp.bfloat16), w_out_h_ref[...],
                       preferred_element_type=jnp.float32)              # (H, N, C)
    out = jnp.sum(out_h, axis=0) + b_out_ref[...]                       # (N, C)
    val_ref[0] = out.astype(val_ref.dtype)


def multihead_self_attention(x, w_in, b_in, w_out, b_out, num_heads,
                             mask=None, need_weights=True):
    """x: (B, N, C) float32.
    w_in: (3C, C) in_proj_weight, b_in: (3C,), w_out: (C, C) out_proj.weight, b_out: (C,).
    mask: optional (B, N) bool key_padding_mask (True = ignore key).
    Returns (value (B,N,C), attn (B,N,N) averaged over heads or None)."""
    B, N, C = x.shape
    H = num_heads
    assert C % H == 0
    hd = C // H

    # Pre-transpose / pre-reshape weights in the wrapper (free, one-time XLA ops) and
    # ship them to the kernel already in bf16 (halves weight DMA traffic).
    w_in_t = jnp.transpose(w_in).astype(jnp.bfloat16)                    # (C, 3C)
    w_out_h = jnp.transpose(w_out).reshape(H, hd, C).astype(jnp.bfloat16)  # (H, hd, C)
    b_in2 = b_in.reshape(1, 3 * C).astype(jnp.float32)
    b_out2 = b_out.reshape(1, C).astype(jnp.float32)

    inputs = [x, w_in_t, b_in2, w_out_h, b_out2]
    in_specs = [
        pl.BlockSpec((1, N, C), lambda b: (b, 0, 0)),        # x
        pl.BlockSpec((C, 3 * C), lambda b: (0, 0)),          # in_proj weight (pre-transposed, bf16)
        pl.BlockSpec((1, 3 * C), lambda b: (0, 0)),          # in_proj bias
        pl.BlockSpec((H, hd, C), lambda b: (0, 0, 0)),       # out_proj weight, per-head (bf16)
        pl.BlockSpec((1, C), lambda b: (0, 0)),              # out_proj bias
    ]

    with_mask = mask is not None
    if with_mask:
        mask_bias = jnp.where(mask, -jnp.inf, 0.0).astype(jnp.float32).reshape(B, 1, N)
        inputs.append(mask_bias)
        in_specs.append(pl.BlockSpec((1, 1, N), lambda b: (b, 0, 0)))

    out_shape = [jax.ShapeDtypeStruct((B, N, C), x.dtype)]
    out_specs = [pl.BlockSpec((1, N, C), lambda b: (b, 0, 0))]
    if need_weights:
        out_shape.append(jax.ShapeDtypeStruct((B, N, N), jnp.float32))
        out_specs.append(pl.BlockSpec((1, N, N), lambda b: (b, 0, 0)))

    kernel = partial(_mha_kernel, num_heads=H, with_mask=with_mask, need_weights=need_weights)

    results = pl.pallas_call(
        kernel,
        out_shape=tuple(out_shape),
        grid_spec=pltpu.PrefetchScalarGridSpec(
            num_scalar_prefetch=0,
            grid=(B,),
            in_specs=in_specs,
            out_specs=out_specs,
        ),
        compiler_params=pltpu.CompilerParams(dimension_semantics=("parallel",)),
    )(*inputs)

    if need_weights:
        value, attn = results
        return value, attn
    value = results[0] if isinstance(results, (tuple, list)) else results
    return value, None


def reference_mha(x, w_in, b_in, w_out, b_out, num_heads, mask=None):
    B, N, C = x.shape
    hd = C // num_heads
    scale = 1.0 / math.sqrt(hd)
    qkv = jnp.einsum("bnc,dc->bnd", x, w_in) + b_in
    q, k, v = jnp.split(qkv, 3, axis=-1)
    q = q.reshape(B, N, num_heads, hd).transpose(0, 2, 1, 3)
    k = k.reshape(B, N, num_heads, hd).transpose(0, 2, 1, 3)
    v = v.reshape(B, N, num_heads, hd).transpose(0, 2, 1, 3)
    s = jnp.einsum("bhnd,bhmd->bhnm", q, k) * scale
    if mask is not None:
        s = s + jnp.where(mask, -jnp.inf, 0.0)[:, None, None, :]
    p = jax.nn.softmax(s, axis=-1)
    ctx = jnp.einsum("bhnm,bhmd->bhnd", p, v).transpose(0, 2, 1, 3).reshape(B, N, C)
    out = jnp.einsum("bnc,dc->bnd", ctx, w_out) + b_out
    return out, p.mean(axis=1)


if __name__ == "__main__":
    B, N, C, H = 2, 16, 64, 8

    key = jax.random.PRNGKey(0)
    kx, kwi, kbi, kwo, kbo = jax.random.split(key, 5)
    x = jax.random.normal(kx, (B, N, C), jnp.float32)
    w_in = jax.random.normal(kwi, (3 * C, C), jnp.float32) * (1.0 / math.sqrt(C))
    b_in = jax.random.normal(kbi, (3 * C,), jnp.float32) * 0.02
    w_out = jax.random.normal(kwo, (C, C), jnp.float32) * (1.0 / math.sqrt(C))
    b_out = jax.random.normal(kbo, (C,), jnp.float32) * 0.02

    # --- unmasked path (no mask DMA / no mask adds compiled in) ---
    value, attn = multihead_self_attention(x, w_in, b_in, w_out, b_out, H, mask=None)
    value = jax.block_until_ready(value)
    attn = jax.block_until_ready(attn)
    value_ref, attn_ref = reference_mha(x, w_in, b_in, w_out, b_out, H, mask=None)
    assert value.shape == (B, N, C) and attn.shape == (B, N, N)
    # bf16 MXU operands + approx reciprocal -> compare against f32 reference with loose tol.
    assert jnp.allclose(value, value_ref, atol=5e-2, rtol=5e-2)
    assert jnp.allclose(attn, attn_ref, atol=2e-2, rtol=2e-2)

    # --- masked path (key_padding_mask, True = ignore key; not all keys masked per row) ---
    mask = jnp.zeros((B, N), jnp.bool_).at[0, N - 4:].set(True)
    value_m, attn_m = multihead_self_attention(x, w_in, b_in, w_out, b_out, H, mask=mask)
    value_m = jax.block_until_ready(value_m)
    attn_m = jax.block_until_ready(attn_m)
    value_mr, attn_mr = reference_mha(x, w_in, b_in, w_out, b_out, H, mask=mask)
    assert jnp.allclose(value_m, value_mr, atol=5e-2, rtol=5e-2)
    assert jnp.allclose(attn_m, attn_mr, atol=2e-2, rtol=2e-2)

    print("KERNEL_OK")
</pallas_src>

<mosaic_0001>
module attributes {stable_mosaic.version = 11 : i64} {
  func.func @_mha_kernel(%arg0: i32, %arg1: memref<1x16x64xf32, #tpu.memory_space<vmem>>, %arg2: memref<64x192xbf16, #tpu.memory_space<vmem>>, %arg3: memref<1x192xf32, #tpu.memory_space<vmem>>, %arg4: memref<8x8x64xbf16, #tpu.memory_space<vmem>>, %arg5: memref<1x64xf32, #tpu.memory_space<vmem>>, %arg6: memref<1x16x64xf32, #tpu.memory_space<vmem>>, %arg7: memref<1x16x16xf32, #tpu.memory_space<vmem>>) attributes {dimension_semantics = [#tpu.dimension_semantics<parallel>], iteration_bounds = array<i64: 2>, scalar_prefetch = 0 : i64, scratch_operands = 0 : i64, tpu.core_type = #tpu.core_type<tc>, window_params = [{transform_indices = @transform_0, window_bounds = array<i64: 1, 16, 64>}, {pipeline_mode = #tpu.pipeline_mode<synchronous>, transform_indices = @transform_1, window_bounds = array<i64: 64, 192>}, {pipeline_mode = #tpu.pipeline_mode<synchronous>, transform_indices = @transform_2, window_bounds = array<i64: 1, 192>}, {pipeline_mode = #tpu.pipeline_mode<synchronous>, transform_indices = @transform_3, window_bounds = array<i64: 8, 8, 64>}, {pipeline_mode = #tpu.pipeline_mode<synchronous>, transform_indices = @transform_4, window_bounds = array<i64: 1, 64>}, {transform_indices = @transform_5, window_bounds = array<i64: 1, 16, 64>}, {transform_indices = @transform_6, window_bounds = array<i64: 1, 16, 16>}]} {
    %c0 = arith.constant 0 : index
    %c0_0 = arith.constant 0 : index
    %c0_1 = arith.constant 0 : index
    %0 = vector.load %arg1[%c0, %c0_0, %c0_1] : memref<1x16x64xf32, #tpu.memory_space<vmem>>, vector<1x16x64xf32>
    %1 = vector.shape_cast %0 : vector<1x16x64xf32> to vector<16x64xf32>
    %2 = arith.truncf %1 : vector<16x64xf32> to vector<16x64xbf16>
    %c0_2 = arith.constant 0 : index
    %c0_3 = arith.constant 0 : index
    %3 = vector.load %arg2[%c0_2, %c0_3] : memref<64x192xbf16, #tpu.memory_space<vmem>>, vector<64x192xbf16>
    %cst = arith.constant dense<0.000000e+00> : vector<16x192xf32>
    %4 = tpu.matmul %2, %3, %cst {dimension_numbers = #tpu.dot_dimension_numbers<[1], [0], [0], [1], [0, 0, 1, 1], [], []>} : vector<16x64xbf16>, vector<64x192xbf16>, vector<16x192xf32> -> vector<16x192xf32>
    %c0_4 = arith.constant 0 : index
    %c0_5 = arith.constant 0 : index
    %5 = vector.load %arg3[%c0_4, %c0_5] : memref<1x192xf32, #tpu.memory_space<vmem>>, vector<1x192xf32>
    %6 = vector.broadcast %5 : vector<1x192xf32> to vector<16x192xf32>
    %7 = arith.addf %4, %6 : vector<16x192xf32>
    %8 = vector.extract_strided_slice %7 {offsets = [0, 0], sizes = [16, 64], strides = [1, 1]} : vector<16x192xf32> to vector<16x64xf32>
    %cst_6 = arith.constant 0.353553385 : f32
    %9 = vector.broadcast %cst_6 : f32 to vector<16x64xf32>
    %10 = arith.mulf %8, %9 : vector<16x64xf32>
    %11 = vector.extract_strided_slice %7 {offsets = [0, 64], sizes = [16, 64], strides = [1, 1]} : vector<16x192xf32> to vector<16x64xf32>
    %12 = vector.extract_strided_slice %7 {offsets = [0, 128], sizes = [16, 64], strides = [1, 1]} : vector<16x192xf32> to vector<16x64xf32>
    %13 = vector.extract_strided_slice %10 {offsets = [0, 0], sizes = [16, 8], strides = [1, 1]} : vector<16x64xf32> to vector<16x8xf32>
    %14 = vector.extract_strided_slice %10 {offsets = [0, 8], sizes = [16, 8], strides = [1, 1]} : vector<16x64xf32> to vector<16x8xf32>
    %15 = vector.extract_strided_slice %10 {offsets = [0, 16], sizes = [16, 8], strides = [1, 1]} : vector<16x64xf32> to vector<16x8xf32>
    %16 = vector.extract_strided_slice %10 {offsets = [0, 24], sizes = [16, 8], strides = [1, 1]} : vector<16x64xf32> to vector<16x8xf32>
    %17 = vector.extract_strided_slice %10 {offsets = [0, 32], sizes = [16, 8], strides = [1, 1]} : vector<16x64xf32> to vector<16x8xf32>
    %18 = vector.extract_strided_slice %10 {offsets = [0, 40], sizes = [16, 8], strides = [1, 1]} : vector<16x64xf32> to vector<16x8xf32>
    %19 = vector.extract_strided_slice %10 {offsets = [0, 48], sizes = [16, 8], strides = [1, 1]} : vector<16x64xf32> to vector<16x8xf32>
    %20 = vector.extract_strided_slice %10 {offsets = [0, 56], sizes = [16, 8], strides = [1, 1]} : vector<16x64xf32> to vector<16x8xf32>
    %21 = vector.shape_cast %13 : vector<16x8xf32> to vector<1x16x8xf32>
    %22 = vector.shape_cast %14 : vector<16x8xf32> to vector<1x16x8xf32>
    %23 = vector.shape_cast %15 : vector<16x8xf32> to vector<1x16x8xf32>
    %24 = vector.shape_cast %16 : vector<16x8xf32> to vector<1x16x8xf32>
    %25 = vector.shape_cast %17 : vector<16x8xf32> to vector<1x16x8xf32>
    %26 = vector.shape_cast %18 : vector<16x8xf32> to vector<1x16x8xf32>
    %27 = vector.shape_cast %19 : vector<16x8xf32> to vector<1x16x8xf32>
    %28 = vector.shape_cast %20 : vector<16x8xf32> to vector<1x16x8xf32>
    %29 = tpu.concatenate %21, %22, %23, %24, %25, %26, %27, %28 in 0 : vector<1x16x8xf32>, vector<1x16x8xf32>, vector<1x16x8xf32>, vector<1x16x8xf32>, vector<1x16x8xf32>, vector<1x16x8xf32>, vector<1x16x8xf32>, vector<1x16x8xf32> -> vector<8x16x8xf32>
    %30 = arith.truncf %29 : vector<8x16x8xf32> to vector<8x16x8xbf16>
    %31 = vector.extract_strided_slice %11 {offsets = [0, 0], sizes = [16, 8], strides = [1, 1]} : vector<16x64xf32> to vector<16x8xf32>
    %32 = vector.extract_strided_slice %11 {offsets = [0, 8], sizes = [16, 8], strides = [1, 1]} : vector<16x64xf32> to vector<16x8xf32>
    %33 = vector.extract_strided_slice %11 {offsets = [0, 16], sizes = [16, 8], strides = [1, 1]} : vector<16x64xf32> to vector<16x8xf32>
    %34 = vector.extract_strided_slice %11 {offsets = [0, 24], sizes = [16, 8], strides = [1, 1]} : vector<16x64xf32> to vector<16x8xf32>
    %35 = vector.extract_strided_slice %11 {offsets = [0, 32], sizes = [16, 8], strides = [1, 1]} : vector<16x64xf32> to vector<16x8xf32>
    %36 = vector.extract_strided_slice %11 {offsets = [0, 40], sizes = [16, 8], strides = [1, 1]} : vector<16x64xf32> to vector<16x8xf32>
    %37 = vector.extract_strided_slice %11 {offsets = [0, 48], sizes = [16, 8], strides = [1, 1]} : vector<16x64xf32> to vector<16x8xf32>
    %38 = vector.extract_strided_slice %11 {offsets = [0, 56], sizes = [16, 8], strides = [1, 1]} : vector<16x64xf32> to vector<16x8xf32>
    %39 = vector.shape_cast %31 : vector<16x8xf32> to vector<1x16x8xf32>
    %40 = vector.shape_cast %32 : vector<16x8xf32> to vector<1x16x8xf32>
    %41 = vector.shape_cast %33 : vector<16x8xf32> to vector<1x16x8xf32>
    %42 = vector.shape_cast %34 : vector<16x8xf32> to vector<1x16x8xf32>
    %43 = vector.shape_cast %35 : vector<16x8xf32> to vector<1x16x8xf32>
    %44 = vector.shape_cast %36 : vector<16x8xf32> to vector<1x16x8xf32>
    %45 = vector.shape_cast %37 : vector<16x8xf32> to vector<1x16x8xf32>
    %46 = vector.shape_cast %38 : vector<16x8xf32> to vector<1x16x8xf32>
    %47 = tpu.concatenate %39, %40, %41, %42, %43, %44, %45, %46 in 0 : vector<1x16x8xf32>, vector<1x16x8xf32>, vector<1x16x8xf32>, vector<1x16x8xf32>, vector<1x16x8xf32>, vector<1x16x8xf32>, vector<1x16x8xf32>, vector<1x16x8xf32> -> vector<8x16x8xf32>
    %48 = arith.truncf %47 : vector<8x16x8xf32> to vector<8x16x8xbf16>
    %49 = vector.extract_strided_slice %12 {offsets = [0, 0], sizes = [16, 8], strides = [1, 1]} : vector<16x64xf32> to vector<16x8xf32>
    %50 = vector.extract_strided_slice %12 {offsets = [0, 8], sizes = [16, 8], strides = [1, 1]} : vector<16x64xf32> to vector<16x8xf32>
    %51 = vector.extract_strided_slice %12 {offsets = [0, 16], sizes = [16, 8], strides = [1, 1]} : vector<16x64xf32> to vector<16x8xf32>
    %52 = vector.extract_strided_slice %12 {offsets = [0, 24], sizes = [16, 8], strides = [1, 1]} : vector<16x64xf32> to vector<16x8xf32>
    %53 = vector.extract_strided_slice %12 {offsets = [0, 32], sizes = [16, 8], strides = [1, 1]} : vector<16x64xf32> to vector<16x8xf32>
    %54 = vector.extract_strided_slice %12 {offsets = [0, 40], sizes = [16, 8], strides = [1, 1]} : vector<16x64xf32> to vector<16x8xf32>
    %55 = vector.extract_strided_slice %12 {offsets = [0, 48], sizes = [16, 8], strides = [1, 1]} : vector<16x64xf32> to vector<16x8xf32>
    %56 = vector.extract_strided_slice %12 {offsets = [0, 56], sizes = [16, 8], strides = [1, 1]} : vector<16x64xf32> to vector<16x8xf32>
    %57 = vector.shape_cast %49 : vector<16x8xf32> to vector<1x16x8xf32>
    %58 = vector.shape_cast %50 : vector<16x8xf32> to vector<1x16x8xf32>
    %59 = vector.shape_cast %51 : vector<16x8xf32> to vector<1x16x8xf32>
    %60 = vector.shape_cast %52 : vector<16x8xf32> to vector<1x16x8xf32>
    %61 = vector.shape_cast %53 : vector<16x8xf32> to vector<1x16x8xf32>
    %62 = vector.shape_cast %54 : vector<16x8xf32> to vector<1x16x8xf32>
    %63 = vector.shape_cast %55 : vector<16x8xf32> to vector<1x16x8xf32>
    %64 = vector.shape_cast %56 : vector<16x8xf32> to vector<1x16x8xf32>
    %65 = tpu.concatenate %57, %58, %59, %60, %61, %62, %63, %64 in 0 : vector<1x16x8xf32>, vector<1x16x8xf32>, vector<1x16x8xf32>, vector<1x16x8xf32>, vector<1x16x8xf32>, vector<1x16x8xf32>, vector<1x16x8xf32>, vector<1x16x8xf32> -> vector<8x16x8xf32>
    %66 = arith.truncf %65 : vector<8x16x8xf32> to vector<8x16x8xbf16>
    "tpu.trace_start"() <{level = 10 : i32, message = "hnd,hmd->hnm"}> : () -> ()
    %cst_7 = arith.constant dense<0.000000e+00> : vector<8x16x16xf32>
    %67 = tpu.matmul %30, %48, %cst_7 {dimension_numbers = #tpu.dot_dimension_numbers<[2], [2], [1], [1], [0, 0, 0, 1, 1, 1], [0], [0]>} : vector<8x16x8xbf16>, vector<8x16x8xbf16>, vector<8x16x16xf32> -> vector<8x16x16xf32>
    "tpu.trace_stop"() : () -> ()
    %cst_8 = arith.constant dense<0xFF800000> : vector<8x16xf32>
    %68 = vector.multi_reduction <maximumf>, %67, %cst_8 [2] : vector<8x16x16xf32> to vector<8x16xf32>
    %69 = vector.shape_cast %68 : vector<8x16xf32> to vector<8x16x1xf32>
    %70 = vector.broadcast %69 : vector<8x16x1xf32> to vector<8x16x16xf32>
    %71 = arith.subf %67, %70 : vector<8x16x16xf32>
    %72 = math.exp %71 : vector<8x16x16xf32>
    %cst_9 = arith.constant dense<0.000000e+00> : vector<8x16xf32>
    %73 = vector.multi_reduction <add>, %72, %cst_9 [2] : vector<8x16x16xf32> to vector<8x16xf32>
    %74 = vector.shape_cast %73 : vector<8x16xf32> to vector<8x16x1xf32>
    %75 = tpu.reciprocal %74 {approx = true} : vector<8x16x1xf32> -> vector<8x16x1xf32>
    %76 = vector.broadcast %75 : vector<8x16x1xf32> to vector<8x16x16xf32>
    %77 = arith.mulf %72, %76 : vector<8x16x16xf32>
    %cst_10 = arith.constant dense<0.000000e+00> : vector<16x16xf32>
    %78 = vector.multi_reduction <add>, %77, %cst_10 [0] : vector<8x16x16xf32> to vector<16x16xf32>
    %cst_11 = arith.constant 1.250000e-01 : f32
    %79 = vector.broadcast %cst_11 : f32 to vector<16x16xf32>
    %80 = arith.mulf %78, %79 : vector<16x16xf32>
    %c0_12 = arith.constant 0 : index
    %c0_13 = arith.constant 0 : index
    %c0_14 = arith.constant 0 : index
    %81 = vector.load %arg7[%c0_12, %c0_13, %c0_14] : memref<1x16x16xf32, #tpu.memory_space<vmem>>, vector<1x16x16xf32>
    %82 = vector.shape_cast %81 : vector<1x16x16xf32> to vector<16x16xf32>
    %83 = vector.shape_cast %80 : vector<16x16xf32> to vector<1x16x16xf32>
    tpu.vector_store %arg7[%c0_12, %c0_13, %c0_14], %83 {strides = array<i32>} : memref<1x16x16xf32, #tpu.memory_space<vmem>>, vector<1x16x16xf32>,
    %84 = arith.truncf %77 : vector<8x16x16xf32> to vector<8x16x16xbf16>
    "tpu.trace_start"() <{level = 10 : i32, message = "hnm,hmd->hnd"}> : () -> ()
    %cst_15 = arith.constant dense<0.000000e+00> : vector<8x16x8xf32>
    %85 = tpu.matmul %84, %66, %cst_15 {dimension_numbers = #tpu.dot_dimension_numbers<[2], [1], [1], [2], [0, 0, 0, 1, 1, 2], [0], [0]>} : vector<8x16x16xbf16>, vector<8x16x8xbf16>, vector<8x16x8xf32> -> vector<8x16x8xf32>
    "tpu.trace_stop"() : () -> ()
    %86 = arith.truncf %85 : vector<8x16x8xf32> to vector<8x16x8xbf16>
    %c0_16 = arith.constant 0 : index
    %c0_17 = arith.constant 0 : index
    %c0_18 = arith.constant 0 : index
    %87 = vector.load %arg4[%c0_16, %c0_17, %c0_18] : memref<8x8x64xbf16, #tpu.memory_space<vmem>>, vector<8x8x64xbf16>
    "tpu.trace_start"() <{level = 10 : i32, message = "hnd,hdc->hnc"}> : () -> ()
    %cst_19 = arith.constant dense<0.000000e+00> : vector<8x16x64xf32>
    %88 = tpu.matmul %86, %87, %cst_19 {dimension_numbers = #tpu.dot_dimension_numbers<[2], [1], [1], [2], [0, 0, 0, 1, 1, 2], [0], [0]>} : vector<8x16x8xbf16>, vector<8x8x64xbf16>, vector<8x16x64xf32> -> vector<8x16x64xf32>
    "tpu.trace_stop"() : () -> ()
    %cst_20 = arith.constant dense<0.000000e+00> : vector<16x64xf32>
    %89 = vector.multi_reduction <add>, %88, %cst_20 [0] : vector<8x16x64xf32> to vector<16x64xf32>
    %c0_21 = arith.constant 0 : index
    %c0_22 = arith.constant 0 : index
    %90 = vector.load %arg5[%c0_21, %c0_22] : memref<1x64xf32, #tpu.memory_space<vmem>>, vector<1x64xf32>
    %91 = vector.broadcast %90 : vector<1x64xf32> to vector<16x64xf32>
    %92 = arith.addf %89, %91 : vector<16x64xf32>
    %c0_23 = arith.constant 0 : index
    %c0_24 = arith.constant 0 : index
    %c0_25 = arith.constant 0 : index
    %93 = vector.load %arg6[%c0_23, %c0_24, %c0_25] : memref<1x16x64xf32, #tpu.memory_space<vmem>>, vector<1x16x64xf32>
    %94 = vector.shape_cast %93 : vector<1x16x64xf32> to vector<16x64xf32>
    %95 = vector.shape_cast %92 : vector<16x64xf32> to vector<1x16x64xf32>
    tpu.vector_store %arg6[%c0_23, %c0_24, %c0_25], %95 {strides = array<i32>} : memref<1x16x64xf32, #tpu.memory_space<vmem>>, vector<1x16x64xf32>,
    return
  }
  func.func @transform_0(%arg0: i32) -> (i32, i32, i32) {
    %c0_i32 = arith.constant 0 : i32
    %c0_i32_0 = arith.constant 0 : i32
    %c0_i32_1 = arith.constant 0 : i32
    return %arg0, %c0_i32, %c0_i32_0 : i32, i32, i32
  }
  func.func @transform_1(%arg0: i32) -> (i32, i32) {
    %c0_i32 = arith.constant 0 : i32
    %c0_i32_0 = arith.constant 0 : i32
    %c0_i32_1 = arith.constant 0 : i32
    return %c0_i32, %c0_i32_0 : i32, i32
  }
  func.func @transform_2(%arg0: i32) -> (i32, i32) {
    %c0_i32 = arith.constant 0 : i32
    %c0_i32_0 = arith.constant 0 : i32
    %c0_i32_1 = arith.constant 0 : i32
    return %c0_i32, %c0_i32_0 : i32, i32
  }
  func.func @transform_3(%arg0: i32) -> (i32, i32, i32) {
    %c0_i32 = arith.constant 0 : i32
    %c0_i32_0 = arith.constant 0 : i32
    %c0_i32_1 = arith.constant 0 : i32
    %c0_i32_2 = arith.constant 0 : i32
    return %c0_i32, %c0_i32_0, %c0_i32_1 : i32, i32, i32
  }
  func.func @transform_4(%arg0: i32) -> (i32, i32) {
    %c0_i32 = arith.constant 0 : i32
    %c0_i32_0 = arith.constant 0 : i32
    %c0_i32_1 = arith.constant 0 : i32
    return %c0_i32, %c0_i32_0 : i32, i32
  }
  func.func @transform_5(%arg0: i32) -> (i32, i32, i32) {
    %c0_i32 = arith.constant 0 : i32
    %c0_i32_0 = arith.constant 0 : i32
    %c0_i32_1 = arith.constant 0 : i32
    return %arg0, %c0_i32, %c0_i32_0 : i32, i32, i32
  }
  func.func @transform_6(%arg0: i32) -> (i32, i32, i32) {
    %c0_i32 = arith.constant 0 : i32
    %c0_i32_0 = arith.constant 0 : i32
    %c0_i32_1 = arith.constant 0 : i32
    return %arg0, %c0_i32, %c0_i32_0 : i32, i32, i32
  }
}

</mosaic_0001>

<llo_original>
// kernel: tpu_custom_call.1
$region0: #{tpu_custom_call.1}
  #allocation0 [shape = 'u32[]', space=smem, size = 0x4, offset = 0x4, fixed_abs, tag = 'smem constant byte address 0x4 - core index']
  #allocation1 [shape = 'u32[72,128]{1,0:T(1,128)}', space=vmem, size = 0x9000, scoped, tag = 'internal scratch']
  %s0 = inlined_call_operand.hbm [shape: f32[2,16,64], index: 0, kind: input, shape index: {}]
  %s1 = inlined_call_operand.hbm [shape: bf16[64,192], index: 1, kind: input, shape index: {}]
  %s2 = inlined_call_operand.hbm [shape: f32[1,192], index: 2, kind: input, shape index: {}]
  %s3 = inlined_call_operand.hbm [shape: bf16[8,8,64], index: 3, kind: input, shape index: {}]
  %s4 = inlined_call_operand.vmem [shape: f32[1,64], index: 4, kind: input, shape index: {}]
  %s5 = inlined_call_operand.hbm [shape: f32[2,16,64], index: 5, kind: output, shape index: {0}]
  %s6 = inlined_call_operand.hbm [shape: f32[2,16,16], index: 6, kind: output, shape index: {1}]
  %7 = xla_tuple %s5, %s6
  %s8 = sld [smem:[#allocation0]]
  $region77: #{tpu_custom_call.1} parent=0
    _
  %s10 = ssub.s32 1, %s8
  %s11 = scalar_select 0, %s10, %s8
  $region1: #{tpu_custom_call.1} parent=0
    #allocation2 [shape = 'u8[16384]{0}', space=vmem, size = 0x4000, scoped, tag = 'input window, operand 0']
    #allocation3 [shape = 's32[2]{0}', space=sflag, size = 0x8, scoped, tag = 'scoped memory for tpu_custom_call.1']
    #allocation4 [shape = 's32[2]{0}', space=sflag, size = 0x8, scoped, tag = 'scoped memory for tpu_custom_call.1']
    #allocation5 [shape = 'u8[32768]{0}', space=vmem, size = 0x8000, scoped, tag = 'input window, operand 1, single buffered']
    #allocation6 [shape = 's32[1]{0}', space=sflag, size = 0x4, scoped, tag = 'scoped memory for tpu_custom_call.1']
    #allocation7 [shape = 'u8[1024]{0}', space=vmem, size = 0x400, scoped, tag = 'input window, operand 2, single buffered']
    #allocation8 [shape = 'u8[16384]{0}', space=vmem, size = 0x4000, scoped, tag = 'input window, operand 3, single buffered']
    #allocation9 [shape = 's32[1]{0}', space=sflag, size = 0x4, scoped, tag = 'scoped memory for tpu_custom_call.1']
    #allocation10 [shape = 'u8[16384]{0}', space=vmem, size = 0x4000, scoped, tag = 'output window, operand 0']
    #allocation11 [shape = 'u8[16384]{0}', space=vmem, size = 0x4000, scoped, tag = 'output window, operand 1']
    #allocation12 [shape = 's32[2]{0}', space=sflag, size = 0x8, scoped, tag = 'scoped memory for tpu_custom_call.1']
    %12 = vsyncpa [#allocation3], 0
    %s13 = scalar_lea.sflag [#allocation3], 1
    %14 = vsyncpa %s13, 0
    %15 = vsyncpa [#allocation6], 0
    %16 = vsyncpa [#allocation9], 0
    %17 = vsyncpa [#allocation4], 0
    %s18 = scalar_lea.sflag [#allocation4], 1
    %19 = vsyncpa %s18, 0
    %20 = vsyncpa [#allocation12], 0
    %s21 = scalar_lea.sflag [#allocation12], 1
    %22 = vsyncpa %s21, 0
    loop: start=0, step=1, limit=4
    $region2: #{tpu_custom_call.1} parent=1 // loop_pre_header
      _
    $region3: #{tpu_custom_call.1} parent=1 // loop_header
      %s24 = sphi 0, %s28
      %p25 = scmp.ge.s32.totalorder %s24, 4
      %s34 = sphi 0, %s36
      %s37 = sphi 0, %s34
      %s38 = sphi 0, %s37
      %s54 = sphi 0, %s38
      %s58 = sphi 0, %s58
      %s60 = sphi 0, %s58
      %s61 = sphi 0, %s60
      %s75 = sphi 0, %s61
      %s79 = sphi 0, %s79
      %s81 = sphi 0, %s79
      %s82 = sphi 0, %s81
      %s96 = sphi 0, %s82
      %s100 = sphi 0, %s100
      %s102 = sphi 0, %s100
      %s103 = sphi 0, %s102
      %s117 = sphi 0, %s103
      %s121 = sphi 0, %s121
      %s123 = sphi 0, %s121
      %s124 = sphi 0, %s123
      %s138 = sphi 0, %s124
      %s144 = sphi 0, %s146
      %s147 = sphi 0, %s144
      %s148 = sphi 0, %s147
      %s164 = sphi 0, %s148
      %s170 = sphi 0, %s172
      %s173 = sphi 0, %s170
      %s174 = sphi 0, %s173
      %s190 = sphi 0, %s174
    $region4: #{tpu_custom_call.1} parent=1 // loop_header_branch
      %27 = sbr.rel (%p25) target = $region8
    $region5: #{tpu_custom_call.1} parent=1 // loop_body
      %s29 = ssub.s32 %s24, 1
      %s30 = ssub.s32 %s24, 2
      %s31 = sadd.s32 %s24, 1
      %s32 = ssub.s32 %s24, %s31
      %p33 = scmp.eq.s32.totalorder %s32, 0
      %s35 = sadd.s32 %s34, 1
      %s36 = scalar_select %p33, %s34, %s35
      %p39 = pneg %p33
      %p40 = scmp.eq.s32.totalorder %s24, 1
      %p41 = por %p39, %p40
      %p42 = scmp.ne.s32.totalorder %s34, %s37
      %p43 = scmp.eq.s32.totalorder %s24, 0
      %p44 = por %p42, %p43
      %p45 = scmp.ne.s32.totalorder %s34, %s37
      %p46 = scmp.eq.s32.totalorder %s29, 1
      %p47 = por %p45, %p46
      %p48 = scmp.ne.s32.totalorder %s37, %s38
      %p49 = scmp.eq.s32.totalorder %s29, 0
      %p50 = por %p48, %p49
      %p51 = scmp.ne.s32.totalorder %s37, %s38
      %p52 = scmp.eq.s32.totalorder %s30, 1
      %p53 = por %p51, %p52
      %p55 = scmp.ne.s32.totalorder %s38, %s54
      %p56 = scmp.eq.s32.totalorder %s30, 0
      %p57 = por %p55, %p56
      %s59 = sadd.s32 %s58, 1
      %p62 = scmp.eq.s32.totalorder %s24, 1
      %p63 = scmp.ne.s32.totalorder %s58, %s60
      %p64 = scmp.eq.s32.totalorder %s24, 0
      %p65 = por %p63, %p64
      %p66 = scmp.ne.s32.totalorder %s58, %s60
      %p67 = scmp.eq.s32.totalorder %s29, 1
      %p68 = por %p66, %p67
      %p69 = scmp.ne.s32.totalorder %s60, %s61
      %p70 = scmp.eq.s32.totalorder %s29, 0
      %p71 = por %p69, %p70
      %p72 = scmp.ne.s32.totalorder %s60, %s61
      %p73 = scmp.eq.s32.totalorder %s30, 1
      %p74 = por %p72, %p73
      %p76 = scmp.ne.s32.totalorder %s61, %s75
      %p77 = scmp.eq.s32.totalorder %s30, 0
      %p78 = por %p76, %p77
      %s80 = sadd.s32 %s79, 1
      %p83 = scmp.eq.s32.totalorder %s24, 1
      %p84 = scmp.ne.s32.totalorder %s79, %s81
      %p85 = scmp.eq.s32.totalorder %s24, 0
      %p86 = por %p84, %p85
      %p87 = scmp.ne.s32.totalorder %s79, %s81
      %p88 = scmp.eq.s32.totalorder %s29, 1
      %p89 = por %p87, %p88
      %p90 = scmp.ne.s32.totalorder %s81, %s82
      %p91 = scmp.eq.s32.totalorder %s29, 0
      %p92 = por %p90, %p91
      %p93 = scmp.ne.s32.totalorder %s81, %s82
      %p94 = scmp.eq.s32.totalorder %s30, 1
      %p95 = por %p93, %p94
      %p97 = scmp.ne.s32.totalorder %s82, %s96
      %p98 = scmp.eq.s32.totalorder %s30, 0
      %p99 = por %p97, %p98
      %s101 = sadd.s32 %s100, 1
      %p104 = scmp.eq.s32.totalorder %s24, 1
      %p105 = scmp.ne.s32.totalorder %s100, %s102
      %p106 = scmp.eq.s32.totalorder %s24, 0
      %p107 = por %p105, %p106
      %p108 = scmp.ne.s32.totalorder %s100, %s102
      %p109 = scmp.eq.s32.totalorder %s29, 1
      %p110 = por %p108, %p109
      %p111 = scmp.ne.s32.totalorder %s102, %s103
      %p112 = scmp.eq.s32.totalorder %s29, 0
      %p113 = por %p111, %p112
      %p114 = scmp.ne.s32.totalorder %s102, %s103
      %p115 = scmp.eq.s32.totalorder %s30, 1
      %p116 = por %p114, %p115
      %p118 = scmp.ne.s32.totalorder %s103, %s117
      %p119 = scmp.eq.s32.totalorder %s30, 0
      %p120 = por %p118, %p119
      %s122 = sadd.s32 %s121, 1
      %p125 = scmp.eq.s32.totalorder %s24, 1
      %p126 = scmp.ne.s32.totalorder %s121, %s123
      %p127 = scmp.eq.s32.totalorder %s24, 0
      %p128 = por %p126, %p127
      %p129 = scmp.ne.s32.totalorder %s121, %s123
      %p130 = scmp.eq.s32.totalorder %s29, 1
      %p131 = por %p129, %p130
      %p132 = scmp.ne.s32.totalorder %s123, %s124
      %p133 = scmp.eq.s32.totalorder %s29, 0
      %p134 = por %p132, %p133
      %p135 = scmp.ne.s32.totalorder %s123, %s124
      %p136 = scmp.eq.s32.totalorder %s30, 1
      %p137 = por %p135, %p136
      %p139 = scmp.ne.s32.totalorder %s124, %s138
      %p140 = scmp.eq.s32.totalorder %s30, 0
      %p141 = por %p139, %p140
      %s142 = ssub.s32 %s24, %s31
      %p143 = scmp.eq.s32.totalorder %s142, 0
      %s145 = sadd.s32 %s144, 1
      %s146 = scalar_select %p143, %s144, %s145
      %p149 = pneg %p143
      %p150 = scmp.eq.s32.totalorder %s24, 1
      %p151 = por %p149, %p150
      %p152 = scmp.ne.s32.totalorder %s144, %s147
      %p153 = scmp.eq.s32.totalorder %s24, 0
      %p154 = por %p152, %p153
      %p155 = scmp.ne.s32.totalorder %s144, %s147
      %p156 = scmp.eq.s32.totalorder %s29, 1
      %p157 = por %p155, %p156
      %p158 = scmp.ne.s32.totalorder %s147, %s148
      %p159 = scmp.eq.s32.totalorder %s29, 0
      %p160 = por %p158, %p159
      %p161 = scmp.ne.s32.totalorder %s147, %s148
      %p162 = scmp.eq.s32.totalorder %s30, 1
      %p163 = por %p161, %p162
      %p165 = scmp.ne.s32.totalorder %s148, %s164
      %p166 = scmp.eq.s32.totalorder %s30, 0
      %p167 = por %p165, %p166
      %s168 = ssub.s32 %s24, %s31
      %p169 = scmp.eq.s32.totalorder %s168, 0
      %s171 = sadd.s32 %s170, 1
      %s172 = scalar_select %p169, %s170, %s171
      %p175 = pneg %p169
      %p176 = scmp.eq.s32.totalorder %s24, 1
      %p177 = por %p175, %p176
      %p178 = scmp.ne.s32.totalorder %s170, %s173
      %p179 = scmp.eq.s32.totalorder %s24, 0
      %p180 = por %p178, %p179
      %p181 = scmp.ne.s32.totalorder %s170, %s173
      %p182 = scmp.eq.s32.totalorder %s29, 1
      %p183 = por %p181, %p182
      %p184 = scmp.ne.s32.totalorder %s173, %s174
      %p185 = scmp.eq.s32.totalorder %s29, 0
      %p186 = por %p184, %p185
      %p187 = scmp.ne.s32.totalorder %s173, %s174
      %p188 = scmp.eq.s32.totalorder %s30, 1
      %p189 = por %p187, %p188
      %p191 = scmp.ne.s32.totalorder %s174, %s190
      %p192 = scmp.eq.s32.totalorder %s30, 0
      %p193 = por %p191, %p192
      %p194 = scmp.le.s32.totalorder 1, %s24
      %p195 = scmp.lt.s32.totalorder %s24, 3
      %p196 = pnand %p194, %p195
      %p197 = pneg %p196
      // Predicated region
      $region9: #{tpu_custom_call.1} parent=5 // pred_check
        _
      $region10: #{tpu_custom_call.1} parent=5 // pred_check_branch
        %199 = sbr.rel (%p196) target = $region12
      $region11: #{tpu_custom_call.1} parent=5 // pred_region
        %s200 = ssub.s32 %s24, 1
        // Predicated region
        $region13: #{tpu_custom_call.1} parent=11 // pred_check
          %p201 = pneg %p71
        $region14: #{tpu_custom_call.1} parent=11 // pred_check_branch
          %203 = sbr.rel (%p201) target = $region16
        $region15: #{tpu_custom_call.1} parent=11 // pred_region
          %205 = vsyncadd [#allocation6], 0
          %s206 = sshll.u32 %s1, 4
          %s207 = int_to_ptr.hbm [resolvable:$true] %s206
          %s208 = sshll.u32 [#allocation5], 4
          %s209 = int_to_ptr.vmem [resolvable:$true] %s208
          %214 = dma.hbm_to_vmem [thread:$0]  %s207, 1024, %s209, [#allocation6], 128, 128, 8
        $region16: #{tpu_custom_call.1} parent=11 // pred_fallthru
          _
        // Predicated region
        $region17: #{tpu_custom_call.1} parent=11 // pred_check
          %p215 = pneg %p92
        $region18: #{tpu_custom_call.1} parent=11 // pred_check_branch
          %217 = sbr.rel (%p215) target = $region20
        $region19: #{tpu_custom_call.1} parent=11 // pred_region
          %219 = vsyncadd [#allocation6], 0
          %s221 = sshll.u32 %s2, 4
          %s222 = int_to_ptr.hbm [resolvable:$true] %s221
          %s223 = sshll.u32 [#allocation7], 4
          %s224 = int_to_ptr.vmem [resolvable:$true] %s223
          %226 = dma.hbm_to_vmem [thread:$0]  %s222, 32, %s224, [#allocation6]
        $region20: #{tpu_custom_call.1} parent=11 // pred_fallthru
          _
        // Predicated region
        $region21: #{tpu_custom_call.1} parent=11 // pred_check
          %p227 = pneg %p113
        $region22: #{tpu_custom_call.1} parent=11 // pred_check_branch
          %229 = sbr.rel (%p227) target = $region24
        $region23: #{tpu_custom_call.1} parent=11 // pred_region
          %231 = vsyncadd [#allocation9], 0
          %s232 = sshll.u32 %s3, 4
          %s233 = int_to_ptr.hbm [resolvable:$true] %s232
          %s234 = sshll.u32 [#allocation8], 4
          %s235 = int_to_ptr.vmem [resolvable:$true] %s234
          %240 = dma.hbm_to_vmem [thread:$0]  %s233, 512, %s235, [#allocation9], 64, 64, 4
        $region24: #{tpu_custom_call.1} parent=11 // pred_fallthru
          _
        // Predicated region
        $region25: #{tpu_custom_call.1} parent=11 // pred_check
          %p241 = pneg %p134
        $region26: #{tpu_custom_call.1} parent=11 // pred_check_branch
          %243 = sbr.rel (%p241) target = $region28
        $region27: #{tpu_custom_call.1} parent=11 // pred_region
          _
        $region28: #{tpu_custom_call.1} parent=11 // pred_fallthru
          _
      $region12: #{tpu_custom_call.1} parent=5 // pred_fallthru
        _
      %p244 = scmp.lt.s32.totalorder %s24, 2
      // Predicated region
      $region29: #{tpu_custom_call.1} parent=5 // pred_check
        %p245 = pneg %p244
      $region30: #{tpu_custom_call.1} parent=5 // pred_check_branch
        %247 = sbr.rel (%p245) target = $region32
      $region31: #{tpu_custom_call.1} parent=5 // pred_region
        // Predicated region
        $region33: #{tpu_custom_call.1} parent=31 // pred_check
          %p248 = pneg %p44
        $region34: #{tpu_custom_call.1} parent=31 // pred_check_branch
          %250 = sbr.rel (%p248) target = $region36
        $region35: #{tpu_custom_call.1} parent=31 // pred_region
          %s251 = sand.u32 %s34, 1
          %s252 = scalar_lea.sflag [#allocation3], %s251
          %s253 = sand.u32 %s34, 1
          %s254 = smul.addr %s253, 16
          %s255 = scalar_lea.vmem [#allocation2], %s254
          %257 = vsyncadd %s252, 0
          %s258 = smul.addr %s24, 2
          %s259 = smul.addr %s258, 8
          %s260 = scalar_lea.hbm %s0, %s259
          %s261 = sshll.u32 %s260, 4
          %s262 = int_to_ptr.hbm [resolvable:$true] %s261
          %s263 = sshll.u32 %s255, 4
          %s264 = int_to_ptr.vmem [resolvable:$true] %s263
          %269 = dma.hbm_to_vmem [thread:$0]  %s262, 256, %s264, %s252, 128, 128, 8
        $region36: #{tpu_custom_call.1} parent=31 // pred_fallthru
          _
      $region32: #{tpu_custom_call.1} parent=5 // pred_fallthru
        _
      %p270 = scmp.le.s32.totalorder 1, %s24
      %p271 = scmp.lt.s32.totalorder %s24, 3
      %p272 = pnand %p270, %p271
      %p273 = pneg %p272
      // Predicated region
      $region37: #{tpu_custom_call.1} parent=5 // pred_check
        _
      $region38: #{tpu_custom_call.1} parent=5 // pred_check_branch
        %275 = sbr.rel (%p272) target = $region40
      $region39: #{tpu_custom_call.1} parent=5 // pred_region
        %s276 = ssub.s32 %s24, 1
        %s277 = sand.u32 %s37, 1
        %s278 = scalar_lea.sflag [#allocation3], %s277
        %s279 = sand.u32 %s37, 1
        %s280 = smul.addr %s279, 16
        %s281 = scalar_lea.vmem [#allocation2], %s280
        // Predicated region
        $region41: #{tpu_custom_call.1} parent=39 // pred_check
          %p282 = pneg %p50
        $region42: #{tpu_custom_call.1} parent=39 // pred_check_branch
          %284 = sbr.rel (%p282) target = $region44
        $region43: #{tpu_custom_call.1} parent=39 // pred_region
          %286 = dma.done %s278, 256
        $region44: #{tpu_custom_call.1} parent=39 // pred_fallthru
          _
        // Predicated region
        $region45: #{tpu_custom_call.1} parent=39 // pred_check
          %p287 = pneg %p71
        $region46: #{tpu_custom_call.1} parent=39 // pred_check_branch
          %289 = sbr.rel (%p287) target = $region48
        $region47: #{tpu_custom_call.1} parent=39 // pred_region
          %291 = dma.done [#allocation6], 1024
        $region48: #{tpu_custom_call.1} parent=39 // pred_fallthru
          _
        // Predicated region
        $region49: #{tpu_custom_call.1} parent=39 // pred_check
          %p292 = pneg %p92
        $region50: #{tpu_custom_call.1} parent=39 // pred_check_branch
          %294 = sbr.rel (%p292) target = $region52
        $region51: #{tpu_custom_call.1} parent=39 // pred_region
          %296 = dma.done [#allocation6], 32
        $region52: #{tpu_custom_call.1} parent=39 // pred_fallthru
          _
        // Predicated region
        $region53: #{tpu_custom_call.1} parent=39 // pred_check
          %p297 = pneg %p113
        $region54: #{tpu_custom_call.1} parent=39 // pred_check_branch
          %299 = sbr.rel (%p297) target = $region56
        $region55: #{tpu_custom_call.1} parent=39 // pred_region
          %301 = dma.done [#allocation9], 512
        $region56: #{tpu_custom_call.1} parent=39 // pred_fallthru
          _
        %s302 = sand.u32 %s37, 1
        %s303 = scalar_lea.sflag [#allocation3], %s302
        %s304 = sand.u32 %s37, 1
        %s305 = smul.addr %s304, 16
        %s306 = scalar_lea.vmem [#allocation2], %s305
        %p307 = pneg %p50
        %p308 = pneg %p47
        %p309 = pneg %p71
        %p310 = pneg %p68
        %p311 = pneg %p92
        %p312 = pneg %p89
        %p313 = pneg %p113
        %p314 = pneg %p110
        %p315 = pneg %p134
        %p316 = pneg %p131
        %p317 = pneg %p160
        %p318 = pneg %p157
        %s319 = sand.u32 %s147, 1
        %s320 = scalar_lea.sflag [#allocation4], %s319
        %s321 = sand.u32 %s147, 1
        %s322 = smul.addr %s321, 16
        %s323 = scalar_lea.vmem [#allocation10], %s322
        %p324 = pneg %p186
        %p325 = pneg %p183
        %s326 = sand.u32 %s173, 1
        %s327 = scalar_lea.sflag [#allocation12], %s326
        %s328 = sand.u32 %s173, 1
        %s329 = smul.addr %s328, 16
        %s330 = scalar_lea.vmem [#allocation11], %s329
        %v332 = vld [vmem:[%s281] sm:$0xff]
        %v333 = vld [vmem:[%s281 + $0x8] sm:$0xff]
        %v334 = vpack.c.bf16 %v333, %v332
        %v335 = vld [vmem:[#allocation5] sm:$0xff]
        %v336 = vld [vmem:[#allocation5 + $0x8] sm:$0xff]
        %v337 = vld [vmem:[#allocation5 + $0x10] sm:$0xff]
        %v338 = vld [vmem:[#allocation5 + $0x18] sm:$0xff]
        %v339 = vld [vmem:[#allocation5 + $0x20] sm:$0xff]
        %v340 = vld [vmem:[#allocation5 + $0x28] sm:$0xff]
        %v341 = vld [vmem:[#allocation5 + $0x30] sm:$0xff]
        %v342 = vld [vmem:[#allocation5 + $0x38] sm:$0xff]
        %v343 = vld [vmem:[#allocation7] sm:$0x3]
        %v345 = vperm.slane %v343, 0
        %v346 = vperm.slane %v343, 1
        %v357 = vunpack.c.l.b16 %v335
        %v358 = vunpack.c.h.b16 %v335
        %v359 = vunpack.c.l.b16 %v336
        %v360 = vunpack.c.h.b16 %v336
        %v361 = vunpack.c.l.b16 %v337
        %v362 = vunpack.c.h.b16 %v337
        %v363 = vunpack.c.l.b16 %v338
        %v364 = vunpack.c.h.b16 %v338
        %v365 = vunpack.c.l.b16 %v339
        %v366 = vunpack.c.h.b16 %v339
        %v367 = vunpack.c.l.b16 %v340
        %v368 = vunpack.c.h.b16 %v340
        %v369 = vunpack.c.l.b16 %v341
        %v370 = vunpack.c.h.b16 %v341
        %v371 = vunpack.c.l.b16 %v342
        %v372 = vunpack.c.h.b16 %v342
        %v373 = vpack.c.b16 %v359, %v357
        %v374 = vpack.c.b16 %v360, %v358
        %v375 = vpack.c.b16 %v363, %v361
        %v376 = vpack.c.b16 %v364, %v362
        %v377 = vpack.c.b16 %v367, %v365
        %v378 = vpack.c.b16 %v368, %v366
        %v379 = vpack.c.b16 %v371, %v369
        %v380 = vpack.c.b16 %v372, %v370
        %vm389 = vcmask 523264
        %v391 = vsel %vm389, %v334, 0
        %393 = vmatpush.bf16.msra.mxu0 0
        %394 = vmatpush.bf16.msra.mxu0 0
        %395 = vmatpush.bf16.msra.mxu0 0
        %396 = vmatpush.bf16.msra.mxu0 0
        %397 = vmatpush.bf16.msra.mxu0 %v379
        %398 = vmatpush.bf16.msra.mxu0 %v377
        %399 = vmatpush.bf16.msra.mxu0 %v375
        %400 = vmatpush.bf16.msra.mxu0 %v373
        %401 = vmatmul.bf16.gmra.mxu0 %v391
        %v402 = vpop.f32.mrf.mxu0
        %v403 = vadd.f32 %v345, %v402
        %v404 = vpop.f32.mrf.mxu0
        %v405 = vadd.f32 %v345, %v404
        %406 = vdwg.mxu0
        %407 = vmatpush.bf16.msra.mxu0 0
        %408 = vmatpush.bf16.msra.mxu0 0
        %409 = vmatpush.bf16.msra.mxu0 0
        %410 = vmatpush.bf16.msra.mxu0 0
        %411 = vmatpush.bf16.msra.mxu0 %v380
        %412 = vmatpush.bf16.msra.mxu0 %v378
        %413 = vmatpush.bf16.msra.mxu0 %v376
        %414 = vmatpush.bf16.msra.mxu0 %v374
        %415 = vmatmul.bf16.gmra.mxu0 %v391
        %v416 = vpop.f32.mrf.mxu0
        %v417 = vadd.f32 %v346, %v416
        %v418 = vpop.f32.mrf.mxu0
        %v419 = vadd.f32 %v346, %v418
        %420 = vdwg.mxu0
        %v421 = vmul.f32 %v403, 0.35355338
        %v422 = vmul.f32 %v405, 0.35355338
        %425 = vrot.lane.b32.xlu0 %v421, 120
        %v426 = vpop.permute.xlu0 %425
        %427 = vrot.lane.b32.xlu0 %v422, 120
        %v428 = vpop.permute.xlu0 %427
        %431 = vrot.lane.b32.xlu0 %v421, 112
        %v432 = vpop.permute.xlu0 %431
        %433 = vrot.lane.b32.xlu0 %v422, 112
        %v434 = vpop.permute.xlu0 %433
        %437 = vrot.lane.b32.xlu0 %v421, 104
        %v438 = vpop.permute.xlu0 %437
        %439 = vrot.lane.b32.xlu0 %v422, 104
        %v440 = vpop.permute.xlu0 %439
        %443 = vrot.lane.b32.xlu0 %v421, 96
        %v444 = vpop.permute.xlu0 %443
        %445 = vrot.lane.b32.xlu0 %v422, 96
        %v446 = vpop.permute.xlu0 %445
        %449 = vrot.lane.b32.xlu0 %v421, 88
        %v450 = vpop.permute.xlu0 %449
        %451 = vrot.lane.b32.xlu0 %v422, 88
        %v452 = vpop.permute.xlu0 %451
        %455 = vrot.lane.b32.xlu0 %v421, 80
        %v456 = vpop.permute.xlu0 %455
        %457 = vrot.lane.b32.xlu0 %v422, 80
        %v458 = vpop.permute.xlu0 %457
        %461 = vrot.lane.b32.xlu0 %v421, 72
        %v462 = vpop.permute.xlu0 %461
        %463 = vrot.lane.b32.xlu0 %v422, 72
        %v464 = vpop.permute.xlu0 %463
        %v467 = vpack.c.bf16 %v421, %v421
        %v468 = vpack.c.bf16 %v422, %v422
        %v469 = vpack.c.bf16 %v426, %v426
        %v470 = vpack.c.bf16 %v428, %v428
        %v471 = vpack.c.bf16 %v432, %v432
        %v472 = vpack.c.bf16 %v434, %v434
        %v473 = vpack.c.bf16 %v438, %v438
        %v474 = vpack.c.bf16 %v440, %v440
        %v475 = vpack.c.bf16 %v444, %v444
        %v476 = vpack.c.bf16 %v446, %v446
        %v477 = vpack.c.bf16 %v450, %v450
        %v478 = vpack.c.bf16 %v452, %v452
        %v479 = vpack.c.bf16 %v456, %v456
        %v480 = vpack.c.bf16 %v458, %v458
        %v481 = vpack.c.bf16 %v462, %v462
        %v482 = vpack.c.bf16 %v464, %v464
        %485 = vrot.lane.b32.xlu0 %v403, 120
        %v486 = vpop.permute.xlu0 %485
        %487 = vrot.lane.b32.xlu0 %v405, 120
        %v488 = vpop.permute.xlu0 %487
        %491 = vrot.lane.b32.xlu0 %v403, 112
        %v492 = vpop.permute.xlu0 %491
        %493 = vrot.lane.b32.xlu0 %v405, 112
        %v494 = vpop.permute.xlu0 %493
        %497 = vrot.lane.b32.xlu0 %v403, 104
        %v498 = vpop.permute.xlu0 %497
        %499 = vrot.lane.b32.xlu0 %v405, 104
        %v500 = vpop.permute.xlu0 %499
        %503 = vrot.lane.b32.xlu0 %v403, 96
        %v504 = vpop.permute.xlu0 %503
        %505 = vrot.lane.b32.xlu0 %v405, 96
        %v506 = vpop.permute.xlu0 %505
        %509 = vrot.lane.b32.xlu0 %v403, 88
        %v510 = vpop.permute.xlu0 %509
        %511 = vrot.lane.b32.xlu0 %v405, 88
        %v512 = vpop.permute.xlu0 %511
        %515 = vrot.lane.b32.xlu0 %v403, 80
        %v516 = vpop.permute.xlu0 %515
        %517 = vrot.lane.b32.xlu0 %v405, 80
        %v518 = vpop.permute.xlu0 %517
        %521 = vrot.lane.b32.xlu0 %v403, 72
        %v522 = vpop.permute.xlu0 %521
        %523 = vrot.lane.b32.xlu0 %v405, 72
        %v524 = vpop.permute.xlu0 %523
        %v527 = vpack.c.bf16 %v403, %v403
        %v528 = vpack.c.bf16 %v405, %v405
        %v529 = vpack.c.bf16 %v486, %v486
        %v530 = vpack.c.bf16 %v488, %v488
        %v531 = vpack.c.bf16 %v492, %v492
        %v532 = vpack.c.bf16 %v494, %v494
        %v533 = vpack.c.bf16 %v498, %v498
        %v534 = vpack.c.bf16 %v500, %v500
        %v535 = vpack.c.bf16 %v504, %v504
        %v536 = vpack.c.bf16 %v506, %v506
        %v537 = vpack.c.bf16 %v510, %v510
        %v538 = vpack.c.bf16 %v512, %v512
        %v539 = vpack.c.bf16 %v516, %v516
        %v540 = vpack.c.bf16 %v518, %v518
        %v541 = vpack.c.bf16 %v522, %v522
        %v542 = vpack.c.bf16 %v524, %v524
        %545 = vrot.lane.b32.xlu0 %v417, 120
        %v546 = vpop.permute.xlu0 %545
        %547 = vrot.lane.b32.xlu0 %v419, 120
        %v548 = vpop.permute.xlu0 %547
        %551 = vrot.lane.b32.xlu0 %v417, 112
        %v552 = vpop.permute.xlu0 %551
        %553 = vrot.lane.b32.xlu0 %v419, 112
        %v554 = vpop.permute.xlu0 %553
        %557 = vrot.lane.b32.xlu0 %v417, 104
        %v558 = vpop.permute.xlu0 %557
        %559 = vrot.lane.b32.xlu0 %v419, 104
        %v560 = vpop.permute.xlu0 %559
        %563 = vrot.lane.b32.xlu0 %v417, 96
        %v564 = vpop.permute.xlu0 %563
        %565 = vrot.lane.b32.xlu0 %v419, 96
        %v566 = vpop.permute.xlu0 %565
        %569 = vrot.lane.b32.xlu0 %v417, 88
        %v570 = vpop.permute.xlu0 %569
        %571 = vrot.lane.b32.xlu0 %v419, 88
        %v572 = vpop.permute.xlu0 %571
        %575 = vrot.lane.b32.xlu0 %v417, 80
        %v576 = vpop.permute.xlu0 %575
        %577 = vrot.lane.b32.xlu0 %v419, 80
        %v578 = vpop.permute.xlu0 %577
        %581 = vrot.lane.b32.xlu0 %v417, 72
        %v582 = vpop.permute.xlu0 %581
        %583 = vrot.lane.b32.xlu0 %v419, 72
        %v584 = vpop.permute.xlu0 %583
        %v587 = vpack.c.bf16 %v417, %v417
        %v588 = vpack.c.bf16 %v419, %v419
        %v589 = vpack.c.bf16 %v546, %v546
        %v590 = vpack.c.bf16 %v548, %v548
        %v591 = vpack.c.bf16 %v552, %v552
        %v592 = vpack.c.bf16 %v554, %v554
        %v593 = vpack.c.bf16 %v558, %v558
        %v594 = vpack.c.bf16 %v560, %v560
        %v595 = vpack.c.bf16 %v564, %v564
        %v596 = vpack.c.bf16 %v566, %v566
        %v597 = vpack.c.bf16 %v570, %v570
        %v598 = vpack.c.bf16 %v572, %v572
        %v599 = vpack.c.bf16 %v576, %v576
        %v600 = vpack.c.bf16 %v578, %v578
        %v601 = vpack.c.bf16 %v582, %v582
        %v602 = vpack.c.bf16 %v584, %v584
        %v605 = vunpack.c.l.b16 %v467
        %v606 = vunpack.c.l.b16 %v468
        %v607 = vpack.c.b16 %v606, %v605
        %v610 = vunpack.c.l.b16 %v527
        %v611 = vunpack.c.l.b16 %v528
        %v612 = vpack.c.b16 %v611, %v610
        %613 = vrot.lane.b32.xlu0 %v612, 64
        %v614 = vpop.permute.xlu0 %613
        %vm615 = vcmask 64512
        %v617 = vsel %vm615, %v607, 0
        %v620 = vsel %vm615, %v614, 0
        %622 = vmatpush.bf16.xpose.msra.mxu0 0
        %623 = vmatpush.bf16.xpose.msra.mxu0 0
        %624 = vmatpush.bf16.xpose.msra.mxu0 0
        %625 = vmatpush.bf16.xpose.msra.mxu0 0
        %626 = vmatpush.bf16.xpose.msra.mxu0 0
        %627 = vmatpush.bf16.xpose.msra.mxu0 0
        %628 = vmatpush.bf16.xpose.msra.mxu0 0
        %629 = vmatpush.bf16.xpose.msra.mxu0 %v620
        %630 = vmatmul.bf16.gmra.mxu0 %v617
        %v631 = vpop.f32.mrf.mxu0
        %v632 = vadd.f32 0.0, %v631
        %v633 = vpop.f32.mrf.mxu0
        %v634 = vadd.f32 0.0, %v633
        %635 = vdwg.mxu0
        %v638 = vunpack.c.l.b16 %v469
        %v639 = vunpack.c.l.b16 %v470
        %v640 = vpack.c.b16 %v639, %v638
        %v643 = vunpack.c.l.b16 %v529
        %v644 = vunpack.c.l.b16 %v530
        %v645 = vpack.c.b16 %v644, %v643
        %646 = vrot.lane.b32.xlu0 %v645, 64
        %v647 = vpop.permute.xlu0 %646
        %v649 = vsel %vm615, %v640, 0
        %v652 = vsel %vm615, %v647, 0
        %654 = vmatpush.bf16.xpose.msra.mxu0 0
        %655 = vmatpush.bf16.xpose.msra.mxu0 0
        %656 = vmatpush.bf16.xpose.msra.mxu0 0
        %657 = vmatpush.bf16.xpose.msra.mxu0 0
        %658 = vmatpush.bf16.xpose.msra.mxu0 0
        %659 = vmatpush.bf16.xpose.msra.mxu0 0
        %660 = vmatpush.bf16.xpose.msra.mxu0 0
        %661 = vmatpush.bf16.xpose.msra.mxu0 %v652
        %662 = vmatmul.bf16.gmra.mxu0 %v649
        %v663 = vpop.f32.mrf.mxu0
        %v664 = vadd.f32 0.0, %v663
        %v665 = vpop.f32.mrf.mxu0
        %v666 = vadd.f32 0.0, %v665
        %667 = vdwg.mxu0
        %v670 = vunpack.c.l.b16 %v471
        %v671 = vunpack.c.l.b16 %v472
        %v672 = vpack.c.b16 %v671, %v670
        %v675 = vunpack.c.l.b16 %v531
        %v676 = vunpack.c.l.b16 %v532
        %v677 = vpack.c.b16 %v676, %v675
        %678 = vrot.lane.b32.xlu0 %v677, 64
        %v679 = vpop.permute.xlu0 %678
        %v681 = vsel %vm615, %v672, 0
        %v684 = vsel %vm615, %v679, 0
        %686 = vmatpush.bf16.xpose.msra.mxu0 0
        %687 = vmatpush.bf16.xpose.msra.mxu0 0
        %688 = vmatpush.bf16.xpose.msra.mxu0 0
        %689 = vmatpush.bf16.xpose.msra.mxu0 0
        %690 = vmatpush.bf16.xpose.msra.mxu0 0
        %691 = vmatpush.bf16.xpose.msra.mxu0 0
        %692 = vmatpush.bf16.xpose.msra.mxu0 0
        %693 = vmatpush.bf16.xpose.msra.mxu0 %v684
        %694 = vmatmul.bf16.gmra.mxu0 %v681
        %v695 = vpop.f32.mrf.mxu0
        %v696 = vadd.f32 0.0, %v695
        %v697 = vpop.f32.mrf.mxu0
        %v698 = vadd.f32 0.0, %v697
        %699 = vdwg.mxu0
        %v702 = vunpack.c.l.b16 %v473
        %v703 = vunpack.c.l.b16 %v474
        %v704 = vpack.c.b16 %v703, %v702
        %v707 = vunpack.c.l.b16 %v533
        %v708 = vunpack.c.l.b16 %v534
        %v709 = vpack.c.b16 %v708, %v707
        %710 = vrot.lane.b32.xlu0 %v709, 64
        %v711 = vpop.permute.xlu0 %710
        %v713 = vsel %vm615, %v704, 0
        %v716 = vsel %vm615, %v711, 0
        %718 = vmatpush.bf16.xpose.msra.mxu0 0
        %719 = vmatpush.bf16.xpose.msra.mxu0 0
        %720 = vmatpush.bf16.xpose.msra.mxu0 0
        %721 = vmatpush.bf16.xpose.msra.mxu0 0
        %722 = vmatpush.bf16.xpose.msra.mxu0 0
        %723 = vmatpush.bf16.xpose.msra.mxu0 0
        %724 = vmatpush.bf16.xpose.msra.mxu0 0
        %725 = vmatpush.bf16.xpose.msra.mxu0 %v716
        %726 = vmatmul.bf16.gmra.mxu0 %v713
        %v727 = vpop.f32.mrf.mxu0
        %v728 = vadd.f32 0.0, %v727
        %v729 = vpop.f32.mrf.mxu0
        %v730 = vadd.f32 0.0, %v729
        %731 = vdwg.mxu0
        %v734 = vunpack.c.l.b16 %v475
        %v735 = vunpack.c.l.b16 %v476
        %v736 = vpack.c.b16 %v735, %v734
        %v739 = vunpack.c.l.b16 %v535
        %v740 = vunpack.c.l.b16 %v536
        %v741 = vpack.c.b16 %v740, %v739
        %742 = vrot.lane.b32.xlu0 %v741, 64
        %v743 = vpop.permute.xlu0 %742
        %v745 = vsel %vm615, %v736, 0
        %v748 = vsel %vm615, %v743, 0
        %750 = vmatpush.bf16.xpose.msra.mxu0 0
        %751 = vmatpush.bf16.xpose.msra.mxu0 0
        %752 = vmatpush.bf16.xpose.msra.mxu0 0
        %753 = vmatpush.bf16.xpose.msra.mxu0 0
        %754 = vmatpush.bf16.xpose.msra.mxu0 0
        %755 = vmatpush.bf16.xpose.msra.mxu0 0
        %756 = vmatpush.bf16.xpose.msra.mxu0 0
        %757 = vmatpush.bf16.xpose.msra.mxu0 %v748
        %758 = vmatmul.bf16.gmra.mxu0 %v745
        %v759 = vpop.f32.mrf.mxu0
        %v760 = vadd.f32 0.0, %v759
        %v761 = vpop.f32.mrf.mxu0
        %v762 = vadd.f32 0.0, %v761
        %763 = vdwg.mxu0
        %v766 = vunpack.c.l.b16 %v477
        %v767 = vunpack.c.l.b16 %v478
        %v768 = vpack.c.b16 %v767, %v766
        %v771 = vunpack.c.l.b16 %v537
        %v772 = vunpack.c.l.b16 %v538
        %v773 = vpack.c.b16 %v772, %v771
        %774 = vrot.lane.b32.xlu0 %v773, 64
        %v775 = vpop.permute.xlu0 %774
        %v777 = vsel %vm615, %v768, 0
        %v780 = vsel %vm615, %v775, 0
        %782 = vmatpush.bf16.xpose.msra.mxu0 0
        %783 = vmatpush.bf16.xpose.msra.mxu0 0
        %784 = vmatpush.bf16.xpose.msra.mxu0 0
        %785 = vmatpush.bf16.xpose.msra.mxu0 0
        %786 = vmatpush.bf16.xpose.msra.mxu0 0
        %787 = vmatpush.bf16.xpose.msra.mxu0 0
        %788 = vmatpush.bf16.xpose.msra.mxu0 0
        %789 = vmatpush.bf16.xpose.msra.mxu0 %v780
        %790 = vmatmul.bf16.gmra.mxu0 %v777
        %v791 = vpop.f32.mrf.mxu0
        %v792 = vadd.f32 0.0, %v791
        %v793 = vpop.f32.mrf.mxu0
        %v794 = vadd.f32 0.0, %v793
        %795 = vdwg.mxu0
        %v798 = vunpack.c.l.b16 %v479
        %v799 = vunpack.c.l.b16 %v480
        %v800 = vpack.c.b16 %v799, %v798
        %v803 = vunpack.c.l.b16 %v539
        %v804 = vunpack.c.l.b16 %v540
        %v805 = vpack.c.b16 %v804, %v803
        %806 = vrot.lane.b32.xlu0 %v805, 64
        %v807 = vpop.permute.xlu0 %806
        %v809 = vsel %vm615, %v800, 0
        %v812 = vsel %vm615, %v807, 0
        %814 = vmatpush.bf16.xpose.msra.mxu0 0
        %815 = vmatpush.bf16.xpose.msra.mxu0 0
        %816 = vmatpush.bf16.xpose.msra.mxu0 0
        %817 = vmatpush.bf16.xpose.msra.mxu0 0
        %818 = vmatpush.bf16.xpose.msra.mxu0 0
        %819 = vmatpush.bf16.xpose.msra.mxu0 0
        %820 = vmatpush.bf16.xpose.msra.mxu0 0
        %821 = vmatpush.bf16.xpose.msra.mxu0 %v812
        %822 = vmatmul.bf16.gmra.mxu0 %v809
        %v823 = vpop.f32.mrf.mxu0
        %v824 = vadd.f32 0.0, %v823
        %v825 = vpop.f32.mrf.mxu0
        %v826 = vadd.f32 0.0, %v825
        %827 = vdwg.mxu0
        %v830 = vunpack.c.l.b16 %v481
        %v831 = vunpack.c.l.b16 %v482
        %v832 = vpack.c.b16 %v831, %v830
        %v835 = vunpack.c.l.b16 %v541
        %v836 = vunpack.c.l.b16 %v542
        %v837 = vpack.c.b16 %v836, %v835
        %838 = vrot.lane.b32.xlu0 %v837, 64
        %v839 = vpop.permute.xlu0 %838
        %v841 = vsel %vm615, %v832, 0
        %v844 = vsel %vm615, %v839, 0
        %846 = vmatpush.bf16.xpose.msra.mxu0 0
        %847 = vmatpush.bf16.xpose.msra.mxu0 0
        %848 = vmatpush.bf16.xpose.msra.mxu0 0
        %849 = vmatpush.bf16.xpose.msra.mxu0 0
        %850 = vmatpush.bf16.xpose.msra.mxu0 0
        %851 = vmatpush.bf16.xpose.msra.mxu0 0
        %852 = vmatpush.bf16.xpose.msra.mxu0 0
        %853 = vmatpush.bf16.xpose.msra.mxu0 %v844
        %854 = vmatmul.bf16.gmra.mxu0 %v841
        %v855 = vpop.f32.mrf.mxu0
        %v856 = vadd.f32 0.0, %v855
        %v857 = vpop.f32.mrf.mxu0
        %v858 = vadd.f32 0.0, %v857
        %859 = vdwg.mxu0
        %vm860 = vcmask 130048
        %v861 = vsel %vm860, %v632, -inf
        %862 = vmax.xlane.f32.xlu0 %v861
        %v863 = vpop.xlane.xlu0 %862
        %v864 = vsel %vm860, %v634, -inf
        %865 = vmax.xlane.f32.xlu0 %v864
        %v866 = vpop.xlane.xlu0 %865
        %v867 = vsel %vm860, %v664, -inf
        %868 = vmax.xlane.f32.xlu0 %v867
        %v869 = vpop.xlane.xlu0 %868
        %v870 = vsel %vm860, %v666, -inf
        %871 = vmax.xlane.f32.xlu0 %v870
        %v872 = vpop.xlane.xlu0 %871
        %v873 = vsel %vm860, %v696, -inf
        %874 = vmax.xlane.f32.xlu0 %v873
        %v875 = vpop.xlane.xlu0 %874
        %v876 = vsel %vm860, %v698, -inf
        %877 = vmax.xlane.f32.xlu0 %v876
        %v878 = vpop.xlane.xlu0 %877
        %v879 = vsel %vm860, %v728, -inf
        %880 = vmax.xlane.f32.xlu0 %v879
        %v881 = vpop.xlane.xlu0 %880
        %v882 = vsel %vm860, %v730, -inf
        %883 = vmax.xlane.f32.xlu0 %v882
        %v884 = vpop.xlane.xlu0 %883
        %v885 = vsel %vm860, %v760, -inf
        %886 = vmax.xlane.f32.xlu0 %v885
        %v887 = vpop.xlane.xlu0 %886
        %v888 = vsel %vm860, %v762, -inf
        %889 = vmax.xlane.f32.xlu0 %v888
        %v890 = vpop.xlane.xlu0 %889
        %v891 = vsel %vm860, %v792, -inf
        %892 = vmax.xlane.f32.xlu0 %v891
        %v893 = vpop.xlane.xlu0 %892
        %v894 = vsel %vm860, %v794, -inf
        %895 = vmax.xlane.f32.xlu0 %v894
        %v896 = vpop.xlane.xlu0 %895
        %v897 = vsel %vm860, %v824, -inf
        %898 = vmax.xlane.f32.xlu0 %v897
        %v899 = vpop.xlane.xlu0 %898
        %v900 = vsel %vm860, %v826, -inf
        %901 = vmax.xlane.f32.xlu0 %v900
        %v902 = vpop.xlane.xlu0 %901
        %v903 = vsel %vm860, %v856, -inf
        %904 = vmax.xlane.f32.xlu0 %v903
        %v905 = vpop.xlane.xlu0 %904
        %v906 = vsel %vm860, %v858, -inf
        %907 = vmax.xlane.f32.xlu0 %v906
        %v908 = vpop.xlane.xlu0 %907
        %v909 = vsub.f32 %v632, %v863
        %v910 = vsub.f32 %v634, %v866
        %v911 = vsub.f32 %v664, %v869
        %v912 = vsub.f32 %v666, %v872
        %v913 = vsub.f32 %v696, %v875
        %v914 = vsub.f32 %v698, %v878
        %v915 = vsub.f32 %v728, %v881
        %v916 = vsub.f32 %v730, %v884
        %v917 = vsub.f32 %v760, %v887
        %v918 = vsub.f32 %v762, %v890
        %v919 = vsub.f32 %v792, %v893
        %v920 = vsub.f32 %v794, %v896
        %v921 = vsub.f32 %v824, %v899
        %v922 = vsub.f32 %v826, %v902
        %v923 = vsub.f32 %v856, %v905
        %v924 = vsub.f32 %v858, %v908
        %v925 = vmul.f32 %v909, 1.442695
        %v926 = vpow.pop %v925
        %v927 = vmul.f32 %v910, 1.442695
        %v928 = vpow.pop %v927
        %v929 = vmul.f32 %v911, 1.442695
        %v930 = vpow.pop %v929
        %v931 = vmul.f32 %v912, 1.442695
        %v932 = vpow.pop %v931
        %v933 = vmul.f32 %v913, 1.442695
        %v934 = vpow.pop %v933
        %v935 = vmul.f32 %v914, 1.442695
        %v936 = vpow.pop %v935
        %v937 = vmul.f32 %v915, 1.442695
        %v938 = vpow.pop %v937
        %v939 = vmul.f32 %v916, 1.442695
        %v940 = vpow.pop %v939
        %v941 = vmul.f32 %v917, 1.442695
        %v942 = vpow.pop %v941
        %v943 = vmul.f32 %v918, 1.442695
        %v944 = vpow.pop %v943
        %v945 = vmul.f32 %v919, 1.442695
        %v946 = vpow.pop %v945
        %v947 = vmul.f32 %v920, 1.442695
        %v948 = vpow.pop %v947
        %v949 = vmul.f32 %v921, 1.442695
        %v950 = vpow.pop %v949
        %v951 = vmul.f32 %v922, 1.442695
        %v952 = vpow.pop %v951
        %v953 = vmul.f32 %v923, 1.442695
        %v954 = vpow.pop %v953
        %v955 = vmul.f32 %v924, 1.442695
        %v956 = vpow.pop %v955
        %v957 = vsel %vm860, %v926, 0.0
        %958 = vadd.xlane.f32.xlu0 %v957
        %v959 = vpop.xlane.xlu0 %958
        %v960 = vsel %vm860, %v928, 0.0
        %961 = vadd.xlane.f32.xlu0 %v960
        %v962 = vpop.xlane.xlu0 %961
        %v963 = vsel %vm860, %v930, 0.0
        %964 = vadd.xlane.f32.xlu0 %v963
        %v965 = vpop.xlane.xlu0 %964
        %v966 = vsel %vm860, %v932, 0.0
        %967 = vadd.xlane.f32.xlu0 %v966
        %v968 = vpop.xlane.xlu0 %967
        %v969 = vsel %vm860, %v934, 0.0
        %970 = vadd.xlane.f32.xlu0 %v969
        %v971 = vpop.xlane.xlu0 %970
        %v972 = vsel %vm860, %v936, 0.0
        %973 = vadd.xlane.f32.xlu0 %v972
        %v974 = vpop.xlane.xlu0 %973
        %v975 = vsel %vm860, %v938, 0.0
        %976 = vadd.xlane.f32.xlu0 %v975
        %v977 = vpop.xlane.xlu0 %976
        %v978 = vsel %vm860, %v940, 0.0
        %979 = vadd.xlane.f32.xlu0 %v978
        %v980 = vpop.xlane.xlu0 %979
        %v981 = vsel %vm860, %v942, 0.0
        %982 = vadd.xlane.f32.xlu0 %v981
        %v983 = vpop.xlane.xlu0 %982
        %v984 = vsel %vm860, %v944, 0.0
        %985 = vadd.xlane.f32.xlu0 %v984
        %v986 = vpop.xlane.xlu0 %985
        %v987 = vsel %vm860, %v946, 0.0
        %988 = vadd.xlane.f32.xlu0 %v987
        %v989 = vpop.xlane.xlu0 %988
        %v990 = vsel %vm860, %v948, 0.0
        %991 = vadd.xlane.f32.xlu0 %v990
        %v992 = vpop.xlane.xlu0 %991
        %v993 = vsel %vm860, %v950, 0.0
        %994 = vadd.xlane.f32.xlu0 %v993
        %v995 = vpop.xlane.xlu0 %994
        %v996 = vsel %vm860, %v952, 0.0
        %997 = vadd.xlane.f32.xlu0 %v996
        %v998 = vpop.xlane.xlu0 %997
        %v999 = vsel %vm860, %v954, 0.0
        %1000 = vadd.xlane.f32.xlu0 %v999
        %v1001 = vpop.xlane.xlu0 %1000
        %v1002 = vsel %vm860, %v956, 0.0
        %1003 = vadd.xlane.f32.xlu0 %v1002
        %v1004 = vpop.xlane.xlu0 %1003
        %v1005 = vrcp.pop %v959
        %v1006 = vrcp.pop %v962
        %v1007 = vrcp.pop %v965
        %v1008 = vrcp.pop %v968
        %v1009 = vrcp.pop %v971
        %v1010 = vrcp.pop %v974
        %v1011 = vrcp.pop %v977
        %v1012 = vrcp.pop %v980
        %v1013 = vrcp.pop %v983
        %v1014 = vrcp.pop %v986
        %v1015 = vrcp.pop %v989
        %v1016 = vrcp.pop %v992
        %v1017 = vrcp.pop %v995
        %v1018 = vrcp.pop %v998
        %v1019 = vrcp.pop %v1001
        %v1020 = vrcp.pop %v1004
        %v1021 = vmul.f32 %v926, %v1005
        %v1022 = vmul.f32 %v928, %v1006
        %v1023 = vmul.f32 %v930, %v1007
        %v1024 = vmul.f32 %v932, %v1008
        %v1025 = vmul.f32 %v934, %v1009
        %v1026 = vmul.f32 %v936, %v1010
        %v1027 = vmul.f32 %v938, %v1011
        %v1028 = vmul.f32 %v940, %v1012
        %v1029 = vmul.f32 %v942, %v1013
        %v1030 = vmul.f32 %v944, %v1014
        %v1031 = vmul.f32 %v946, %v1015
        %v1032 = vmul.f32 %v948, %v1016
        %v1033 = vmul.f32 %v950, %v1017
        %v1034 = vmul.f32 %v952, %v1018
        %v1035 = vmul.f32 %v954, %v1019
        %v1036 = vmul.f32 %v956, %v1020
        %v1037 = vsel %vm860, %v1021, 0.0
        %v1038 = vsel %vm860, %v1023, 0.0
        %v1039 = vadd.f32 %v1037, %v1038
        %v1040 = vsel %vm860, %v1025, 0.0
        %v1041 = vadd.f32 %v1039, %v1040
        %v1042 = vsel %vm860, %v1027, 0.0
        %v1043 = vadd.f32 %v1041, %v1042
        %v1044 = vsel %vm860, %v1029, 0.0
        %v1045 = vadd.f32 %v1043, %v1044
        %v1046 = vsel %vm860, %v1031, 0.0
        %v1047 = vadd.f32 %v1045, %v1046
        %v1048 = vsel %vm860, %v1033, 0.0
        %v1049 = vadd.f32 %v1047, %v1048
        %v1050 = vsel %vm860, %v1035, 0.0
        %v1051 = vadd.f32 %v1049, %v1050
        %v1052 = vsel %vm860, %v1022, 0.0
        %v1053 = vsel %vm860, %v1024, 0.0
        %v1054 = vadd.f32 %v1052, %v1053
        %v1055 = vsel %vm860, %v1026, 0.0
        %v1056 = vadd.f32 %v1054, %v1055
        %v1057 = vsel %vm860, %v1028, 0.0
        %v1058 = vadd.f32 %v1056, %v1057
        %v1059 = vsel %vm860, %v1030, 0.0
        %v1060 = vadd.f32 %v1058, %v1059
        %v1061 = vsel %vm860, %v1032, 0.0
        %v1062 = vadd.f32 %v1060, %v1061
        %v1063 = vsel %vm860, %v1034, 0.0
        %v1064 = vadd.f32 %v1062, %v1063
        %v1065 = vsel %vm860, %v1036, 0.0
        %v1066 = vadd.f32 %v1064, %v1065
        %v1067 = vmul.f32 %v1051, 0.125
        %v1068 = vmul.f32 %v1066, 0.125
        %1069 = vst.msk [vmem:[%s330] sm:$0xff] %vm860, %v1067
        %1070 = vst.msk [vmem:[%s330 + $0x8] sm:$0xff] %vm860, %v1068
        %v1071 = vpack.c.bf16 %v1021, %v1021
        %v1072 = vpack.c.bf16 %v1022, %v1022
        %v1073 = vpack.c.bf16 %v1023, %v1023
        %v1074 = vpack.c.bf16 %v1024, %v1024
        %v1075 = vpack.c.bf16 %v1025, %v1025
        %v1076 = vpack.c.bf16 %v1026, %v1026
        %v1077 = vpack.c.bf16 %v1027, %v1027
        %v1078 = vpack.c.bf16 %v1028, %v1028
        %v1079 = vpack.c.bf16 %v1029, %v1029
        %v1080 = vpack.c.bf16 %v1030, %v1030
        %v1081 = vpack.c.bf16 %v1031, %v1031
        %v1082 = vpack.c.bf16 %v1032, %v1032
        %v1083 = vpack.c.bf16 %v1033, %v1033
        %v1084 = vpack.c.bf16 %v1034, %v1034
        %v1085 = vpack.c.bf16 %v1035, %v1035
        %v1086 = vpack.c.bf16 %v1036, %v1036
        %v1089 = vunpack.c.l.b16 %v1071
        %v1090 = vunpack.c.l.b16 %v1072
        %v1091 = vpack.c.b16 %v1090, %v1089
        %v1094 = vunpack.c.l.b16 %v587
        %v1095 = vunpack.c.l.b16 %v588
        %v1096 = vpack.c.b16 %v1095, %v1094
        %v1099 = vsel %vm860, %v1091, 0
        %1101 = vmatpush.bf16.msra.mxu0 0
        %1102 = vmatpush.bf16.msra.mxu0 0
        %1103 = vmatpush.bf16.msra.mxu0 0
        %1104 = vmatpush.bf16.msra.mxu0 0
        %1105 = vmatpush.bf16.msra.mxu0 0
        %1106 = vmatpush.bf16.msra.mxu0 0
        %1107 = vmatpush.bf16.msra.mxu0 0
        %1108 = vmatpush.bf16.msra.mxu0 %v1096
        %1109 = vmatmul.bf16.gmra.mxu0 %v1099
        %v1110 = vpop.f32.mrf.mxu0
        %v1111 = vadd.f32 0.0, %v1110
        %v1112 = vpop.f32.mrf.mxu0
        %v1113 = vadd.f32 0.0, %v1112
        %1114 = vdwg.mxu0
        %v1117 = vunpack.c.l.b16 %v1073
        %v1118 = vunpack.c.l.b16 %v1074
        %v1119 = vpack.c.b16 %v1118, %v1117
        %v1122 = vunpack.c.l.b16 %v589
        %v1123 = vunpack.c.l.b16 %v590
        %v1124 = vpack.c.b16 %v1123, %v1122
        %v1127 = vsel %vm860, %v1119, 0
        %1129 = vmatpush.bf16.msra.mxu0 0
        %1130 = vmatpush.bf16.msra.mxu0 0
        %1131 = vmatpush.bf16.msra.mxu0 0
        %1132 = vmatpush.bf16.msra.mxu0 0
        %1133 = vmatpush.bf16.msra.mxu0 0
        %1134 = vmatpush.bf16.msra.mxu0 0
        %1135 = vmatpush.bf16.msra.mxu0 0
        %1136 = vmatpush.bf16.msra.mxu0 %v1124
        %1137 = vmatmul.bf16.gmra.mxu0 %v1127
        %v1138 = vpop.f32.mrf.mxu0
        %v1139 = vadd.f32 0.0, %v1138
        %v1140 = vpop.f32.mrf.mxu0
        %v1141 = vadd.f32 0.0, %v1140
        %1142 = vdwg.mxu0
        %v1145 = vunpack.c.l.b16 %v1075
        %v1146 = vunpack.c.l.b16 %v1076
        %v1147 = vpack.c.b16 %v1146, %v1145
        %v1150 = vunpack.c.l.b16 %v591
        %v1151 = vunpack.c.l.b16 %v592
        %v1152 = vpack.c.b16 %v1151, %v1150
        %v1155 = vsel %vm860, %v1147, 0
        %1157 = vmatpush.bf16.msra.mxu0 0
        %1158 = vmatpush.bf16.msra.mxu0 0
        %1159 = vmatpush.bf16.msra.mxu0 0
        %1160 = vmatpush.bf16.msra.mxu0 0
        %1161 = vmatpush.bf16.msra.mxu0 0
        %1162 = vmatpush.bf16.msra.mxu0 0
        %1163 = vmatpush.bf16.msra.mxu0 0
        %1164 = vmatpush.bf16.msra.mxu0 %v1152
        %1165 = vmatmul.bf16.gmra.mxu0 %v1155
        %v1166 = vpop.f32.mrf.mxu0
        %v1167 = vadd.f32 0.0, %v1166
        %v1168 = vpop.f32.mrf.mxu0
        %v1169 = vadd.f32 0.0, %v1168
        %1170 = vdwg.mxu0
        %v1173 = vunpack.c.l.b16 %v1077
        %v1174 = vunpack.c.l.b16 %v1078
        %v1175 = vpack.c.b16 %v1174, %v1173
        %v1178 = vunpack.c.l.b16 %v593
        %v1179 = vunpack.c.l.b16 %v594
        %v1180 = vpack.c.b16 %v1179, %v1178
        %v1183 = vsel %vm860, %v1175, 0
        %1185 = vmatpush.bf16.msra.mxu0 0
        %1186 = vmatpush.bf16.msra.mxu0 0
        %1187 = vmatpush.bf16.msra.mxu0 0
        %1188 = vmatpush.bf16.msra.mxu0 0
        %1189 = vmatpush.bf16.msra.mxu0 0
        %1190 = vmatpush.bf16.msra.mxu0 0
        %1191 = vmatpush.bf16.msra.mxu0 0
        %1192 = vmatpush.bf16.msra.mxu0 %v1180
        %1193 = vmatmul.bf16.gmra.mxu0 %v1183
        %v1194 = vpop.f32.mrf.mxu0
        %v1195 = vadd.f32 0.0, %v1194
        %v1196 = vpop.f32.mrf.mxu0
        %v1197 = vadd.f32 0.0, %v1196
        %1198 = vdwg.mxu0
        %v1201 = vunpack.c.l.b16 %v1079
        %v1202 = vunpack.c.l.b16 %v1080
        %v1203 = vpack.c.b16 %v1202, %v1201
        %v1206 = vunpack.c.l.b16 %v595
        %v1207 = vunpack.c.l.b16 %v596
        %v1208 = vpack.c.b16 %v1207, %v1206
        %v1211 = vsel %vm860, %v1203, 0
        %1213 = vmatpush.bf16.msra.mxu0 0
        %1214 = vmatpush.bf16.msra.mxu0 0
        %1215 = vmatpush.bf16.msra.mxu0 0
        %1216 = vmatpush.bf16.msra.mxu0 0
        %1217 = vmatpush.bf16.msra.mxu0 0
        %1218 = vmatpush.bf16.msra.mxu0 0
        %1219 = vmatpush.bf16.msra.mxu0 0
        %1220 = vmatpush.bf16.msra.mxu0 %v1208
        %1221 = vmatmul.bf16.gmra.mxu0 %v1211
        %v1222 = vpop.f32.mrf.mxu0
        %v1223 = vadd.f32 0.0, %v1222
        %v1224 = vpop.f32.mrf.mxu0
        %v1225 = vadd.f32 0.0, %v1224
        %1226 = vdwg.mxu0
        %v1229 = vunpack.c.l.b16 %v1081
        %v1230 = vunpack.c.l.b16 %v1082
        %v1231 = vpack.c.b16 %v1230, %v1229
        %v1234 = vunpack.c.l.b16 %v597
        %v1235 = vunpack.c.l.b16 %v598
        %v1236 = vpack.c.b16 %v1235, %v1234
        %v1239 = vsel %vm860, %v1231, 0
        %1241 = vmatpush.bf16.msra.mxu0 0
        %1242 = vmatpush.bf16.msra.mxu0 0
        %1243 = vmatpush.bf16.msra.mxu0 0
        %1244 = vmatpush.bf16.msra.mxu0 0
        %1245 = vmatpush.bf16.msra.mxu0 0
        %1246 = vmatpush.bf16.msra.mxu0 0
        %1247 = vmatpush.bf16.msra.mxu0 0
        %1248 = vmatpush.bf16.msra.mxu0 %v1236
        %1249 = vmatmul.bf16.gmra.mxu0 %v1239
        %v1250 = vpop.f32.mrf.mxu0
        %v1251 = vadd.f32 0.0, %v1250
        %v1252 = vpop.f32.mrf.mxu0
        %v1253 = vadd.f32 0.0, %v1252
        %1254 = vdwg.mxu0
        %v1257 = vunpack.c.l.b16 %v1083
        %v1258 = vunpack.c.l.b16 %v1084
        %v1259 = vpack.c.b16 %v1258, %v1257
        %v1262 = vunpack.c.l.b16 %v599
        %v1263 = vunpack.c.l.b16 %v600
        %v1264 = vpack.c.b16 %v1263, %v1262
        %v1267 = vsel %vm860, %v1259, 0
        %1269 = vmatpush.bf16.msra.mxu0 0
        %1270 = vmatpush.bf16.msra.mxu0 0
        %1271 = vmatpush.bf16.msra.mxu0 0
        %1272 = vmatpush.bf16.msra.mxu0 0
        %1273 = vmatpush.bf16.msra.mxu0 0
        %1274 = vmatpush.bf16.msra.mxu0 0
        %1275 = vmatpush.bf16.msra.mxu0 0
        %1276 = vmatpush.bf16.msra.mxu0 %v1264
        %1277 = vmatmul.bf16.gmra.mxu0 %v1267
        %v1278 = vpop.f32.mrf.mxu0
        %v1279 = vadd.f32 0.0, %v1278
        %v1280 = vpop.f32.mrf.mxu0
        %v1281 = vadd.f32 0.0, %v1280
        %1282 = vdwg.mxu0
        %v1285 = vunpack.c.l.b16 %v1085
        %v1286 = vunpack.c.l.b16 %v1086
        %v1287 = vpack.c.b16 %v1286, %v1285
        %v1290 = vunpack.c.l.b16 %v601
        %v1291 = vunpack.c.l.b16 %v602
        %v1292 = vpack.c.b16 %v1291, %v1290
        %v1295 = vsel %vm860, %v1287, 0
        %1297 = vmatpush.bf16.msra.mxu0 0
        %1298 = vmatpush.bf16.msra.mxu0 0
        %1299 = vmatpush.bf16.msra.mxu0 0
        %1300 = vmatpush.bf16.msra.mxu0 0
        %1301 = vmatpush.bf16.msra.mxu0 0
        %1302 = vmatpush.bf16.msra.mxu0 0
        %1303 = vmatpush.bf16.msra.mxu0 0
        %1304 = vmatpush.bf16.msra.mxu0 %v1292
        %1305 = vmatmul.bf16.gmra.mxu0 %v1295
        %v1306 = vpop.f32.mrf.mxu0
        %v1307 = vadd.f32 0.0, %v1306
        %v1308 = vpop.f32.mrf.mxu0
        %v1309 = vadd.f32 0.0, %v1308
        %1310 = vdwg.mxu0
        %v1311 = vpack.c.bf16 %v1111, %v1111
        %v1312 = vpack.c.bf16 %v1113, %v1113
        %v1313 = vpack.c.bf16 %v1139, %v1139
        %v1314 = vpack.c.bf16 %v1141, %v1141
        %v1315 = vpack.c.bf16 %v1167, %v1167
        %v1316 = vpack.c.bf16 %v1169, %v1169
        %v1317 = vpack.c.bf16 %v1195, %v1195
        %v1318 = vpack.c.bf16 %v1197, %v1197
        %v1319 = vpack.c.bf16 %v1223, %v1223
        %v1320 = vpack.c.bf16 %v1225, %v1225
        %v1321 = vpack.c.bf16 %v1251, %v1251
        %v1322 = vpack.c.bf16 %v1253, %v1253
        %v1323 = vpack.c.bf16 %v1279, %v1279
        %v1324 = vpack.c.bf16 %v1281, %v1281
        %v1325 = vpack.c.bf16 %v1307, %v1307
        %v1326 = vpack.c.bf16 %v1309, %v1309
        %v1327 = vld [vmem:[#allocation8] sm:$0xf]
        %v1328 = vld [vmem:[#allocation8 + $0x4] sm:$0xf]
        %v1329 = vld [vmem:[#allocation8 + $0x8] sm:$0xf]
        %v1330 = vld [vmem:[#allocation8 + $0xc] sm:$0xf]
        %v1331 = vld [vmem:[#allocation8 + $0x10] sm:$0xf]
        %v1332 = vld [vmem:[#allocation8 + $0x14] sm:$0xf]
        %v1333 = vld [vmem:[#allocation8 + $0x18] sm:$0xf]
        %v1334 = vld [vmem:[#allocation8 + $0x1c] sm:$0xf]
        %v1337 = vunpack.c.l.b16 %v1311
        %v1338 = vunpack.c.l.b16 %v1312
        %v1339 = vpack.c.b16 %v1338, %v1337
        %v1341 = vsel %vm615, %v1339, 0
        %vm1343 = vcmask 1043456
        %v1345 = vsel %vm1343, %v1327, 0
        %1347 = vmatpush.bf16.msra.mxu0 0
        %1348 = vmatpush.bf16.msra.mxu0 0
        %1349 = vmatpush.bf16.msra.mxu0 0
        %1350 = vmatpush.bf16.msra.mxu0 0
        %1351 = vmatpush.bf16.msra.mxu0 0
        %1352 = vmatpush.bf16.msra.mxu0 0
        %1353 = vmatpush.bf16.msra.mxu0 0
        %1354 = vmatpush.bf16.msra.mxu0 %v1345
        %1355 = vmatmul.bf16.gmra.mxu0 %v1341
        %v1356 = vpop.f32.mrf.mxu0
        %v1357 = vadd.f32 0.0, %v1356
        %v1358 = vpop.f32.mrf.mxu0
        %v1359 = vadd.f32 0.0, %v1358
        %1360 = vdwg.mxu0
        %v1363 = vunpack.c.l.b16 %v1313
        %v1364 = vunpack.c.l.b16 %v1314
        %v1365 = vpack.c.b16 %v1364, %v1363
        %v1367 = vsel %vm615, %v1365, 0
        %v1370 = vsel %vm1343, %v1328, 0
        %1372 = vmatpush.bf16.msra.mxu0 0
        %1373 = vmatpush.bf16.msra.mxu0 0
        %1374 = vmatpush.bf16.msra.mxu0 0
        %1375 = vmatpush.bf16.msra.mxu0 0
        %1376 = vmatpush.bf16.msra.mxu0 0
        %1377 = vmatpush.bf16.msra.mxu0 0
        %1378 = vmatpush.bf16.msra.mxu0 0
        %1379 = vmatpush.bf16.msra.mxu0 %v1370
        %1380 = vmatmul.bf16.gmra.mxu0 %v1367
        %v1381 = vpop.f32.mrf.mxu0
        %v1382 = vadd.f32 0.0, %v1381
        %v1383 = vpop.f32.mrf.mxu0
        %v1384 = vadd.f32 0.0, %v1383
        %1385 = vdwg.mxu0
        %v1388 = vunpack.c.l.b16 %v1315
        %v1389 = vunpack.c.l.b16 %v1316
        %v1390 = vpack.c.b16 %v1389, %v1388
        %v1392 = vsel %vm615, %v1390, 0
        %v1395 = vsel %vm1343, %v1329, 0
        %1397 = vmatpush.bf16.msra.mxu0 0
        %1398 = vmatpush.bf16.msra.mxu0 0
        %1399 = vmatpush.bf16.msra.mxu0 0
        %1400 = vmatpush.bf16.msra.mxu0 0
        %1401 = vmatpush.bf16.msra.mxu0 0
        %1402 = vmatpush.bf16.msra.mxu0 0
        %1403 = vmatpush.bf16.msra.mxu0 0
        %1404 = vmatpush.bf16.msra.mxu0 %v1395
        %1405 = vmatmul.bf16.gmra.mxu0 %v1392
        %v1406 = vpop.f32.mrf.mxu0
        %v1407 = vadd.f32 0.0, %v1406
        %v1408 = vpop.f32.mrf.mxu0
        %v1409 = vadd.f32 0.0, %v1408
        %1410 = vdwg.mxu0
        %v1413 = vunpack.c.l.b16 %v1317
        %v1414 = vunpack.c.l.b16 %v1318
        %v1415 = vpack.c.b16 %v1414, %v1413
        %v1417 = vsel %vm615, %v1415, 0
        %v1420 = vsel %vm1343, %v1330, 0
        %1422 = vmatpush.bf16.msra.mxu0 0
        %1423 = vmatpush.bf16.msra.mxu0 0
        %1424 = vmatpush.bf16.msra.mxu0 0
        %1425 = vmatpush.bf16.msra.mxu0 0
        %1426 = vmatpush.bf16.msra.mxu0 0
        %1427 = vmatpush.bf16.msra.mxu0 0
        %1428 = vmatpush.bf16.msra.mxu0 0
        %1429 = vmatpush.bf16.msra.mxu0 %v1420
        %1430 = vmatmul.bf16.gmra.mxu0 %v1417
        %v1431 = vpop.f32.mrf.mxu0
        %v1432 = vadd.f32 0.0, %v1431
        %v1433 = vpop.f32.mrf.mxu0
        %v1434 = vadd.f32 0.0, %v1433
        %1435 = vdwg.mxu0
        %v1438 = vunpack.c.l.b16 %v1319
        %v1439 = vunpack.c.l.b16 %v1320
        %v1440 = vpack.c.b16 %v1439, %v1438
        %v1442 = vsel %vm615, %v1440, 0
        %v1445 = vsel %vm1343, %v1331, 0
        %1447 = vmatpush.bf16.msra.mxu0 0
        %1448 = vmatpush.bf16.msra.mxu0 0
        %1449 = vmatpush.bf16.msra.mxu0 0
        %1450 = vmatpush.bf16.msra.mxu0 0
        %1451 = vmatpush.bf16.msra.mxu0 0
        %1452 = vmatpush.bf16.msra.mxu0 0
        %1453 = vmatpush.bf16.msra.mxu0 0
        %1454 = vmatpush.bf16.msra.mxu0 %v1445
        %1455 = vmatmul.bf16.gmra.mxu0 %v1442
        %v1456 = vpop.f32.mrf.mxu0
        %v1457 = vadd.f32 0.0, %v1456
        %v1458 = vpop.f32.mrf.mxu0
        %v1459 = vadd.f32 0.0, %v1458
        %1460 = vdwg.mxu0
        %v1463 = vunpack.c.l.b16 %v1321
        %v1464 = vunpack.c.l.b16 %v1322
        %v1465 = vpack.c.b16 %v1464, %v1463
        %v1467 = vsel %vm615, %v1465, 0
        %v1470 = vsel %vm1343, %v1332, 0
        %1472 = vmatpush.bf16.msra.mxu0 0
        %1473 = vmatpush.bf16.msra.mxu0 0
        %1474 = vmatpush.bf16.msra.mxu0 0
        %1475 = vmatpush.bf16.msra.mxu0 0
        %1476 = vmatpush.bf16.msra.mxu0 0
        %1477 = vmatpush.bf16.msra.mxu0 0
        %1478 = vmatpush.bf16.msra.mxu0 0
        %1479 = vmatpush.bf16.msra.mxu0 %v1470
        %1480 = vmatmul.bf16.gmra.mxu0 %v1467
        %v1481 = vpop.f32.mrf.mxu0
        %v1482 = vadd.f32 0.0, %v1481
        %v1483 = vpop.f32.mrf.mxu0
        %v1484 = vadd.f32 0.0, %v1483
        %1485 = vdwg.mxu0
        %v1488 = vunpack.c.l.b16 %v1323
        %v1489 = vunpack.c.l.b16 %v1324
        %v1490 = vpack.c.b16 %v1489, %v1488
        %v1492 = vsel %vm615, %v1490, 0
        %v1495 = vsel %vm1343, %v1333, 0
        %1497 = vmatpush.bf16.msra.mxu0 0
        %1498 = vmatpush.bf16.msra.mxu0 0
        %1499 = vmatpush.bf16.msra.mxu0 0
        %1500 = vmatpush.bf16.msra.mxu0 0
        %1501 = vmatpush.bf16.msra.mxu0 0
        %1502 = vmatpush.bf16.msra.mxu0 0
        %1503 = vmatpush.bf16.msra.mxu0 0
        %1504 = vmatpush.bf16.msra.mxu0 %v1495
        %1505 = vmatmul.bf16.gmra.mxu0 %v1492
        %v1506 = vpop.f32.mrf.mxu0
        %v1507 = vadd.f32 0.0, %v1506
        %v1508 = vpop.f32.mrf.mxu0
        %v1509 = vadd.f32 0.0, %v1508
        %1510 = vdwg.mxu0
        %v1513 = vunpack.c.l.b16 %v1325
        %v1514 = vunpack.c.l.b16 %v1326
        %v1515 = vpack.c.b16 %v1514, %v1513
        %v1517 = vsel %vm615, %v1515, 0
        %v1520 = vsel %vm1343, %v1334, 0
        %1522 = vmatpush.bf16.msra.mxu0 0
        %1523 = vmatpush.bf16.msra.mxu0 0
        %1524 = vmatpush.bf16.msra.mxu0 0
        %1525 = vmatpush.bf16.msra.mxu0 0
        %1526 = vmatpush.bf16.msra.mxu0 0
        %1527 = vmatpush.bf16.msra.mxu0 0
        %1528 = vmatpush.bf16.msra.mxu0 0
        %1529 = vmatpush.bf16.msra.mxu0 %v1520
        %1530 = vmatmul.bf16.gmra.mxu0 %v1517
        %v1531 = vpop.f32.mrf.mxu0
        %v1532 = vadd.f32 0.0, %v1531
        %v1533 = vpop.f32.mrf.mxu0
        %v1534 = vadd.f32 0.0, %v1533
        %1535 = vdwg.mxu0
        %v1536 = vsel %vm389, %v1357, 0.0
        %v1537 = vsel %vm389, %v1382, 0.0
        %v1538 = vadd.f32 %v1536, %v1537
        %v1539 = vsel %vm389, %v1407, 0.0
        %v1540 = vadd.f32 %v1538, %v1539
        %v1541 = vsel %vm389, %v1432, 0.0
        %v1542 = vadd.f32 %v1540, %v1541
        %v1543 = vsel %vm389, %v1457, 0.0
        %v1544 = vadd.f32 %v1542, %v1543
        %v1545 = vsel %vm389, %v1482, 0.0
        %v1546 = vadd.f32 %v1544, %v1545
        %v1547 = vsel %vm389, %v1507, 0.0
        %v1548 = vadd.f32 %v1546, %v1547
        %v1549 = vsel %vm389, %v1532, 0.0
        %v1550 = vadd.f32 %v1548, %v1549
        %v1551 = vsel %vm389, %v1359, 0.0
        %v1552 = vsel %vm389, %v1384, 0.0
        %v1553 = vadd.f32 %v1551, %v1552
        %v1554 = vsel %vm389, %v1409, 0.0
        %v1555 = vadd.f32 %v1553, %v1554
        %v1556 = vsel %vm389, %v1434, 0.0
        %v1557 = vadd.f32 %v1555, %v1556
        %v1558 = vsel %vm389, %v1459, 0.0
        %v1559 = vadd.f32 %v1557, %v1558
        %v1560 = vsel %vm389, %v1484, 0.0
        %v1561 = vadd.f32 %v1559, %v1560
        %v1562 = vsel %vm389, %v1509, 0.0
        %v1563 = vadd.f32 %v1561, %v1562
        %v1564 = vsel %vm389, %v1534, 0.0
        %v1565 = vadd.f32 %v1563, %v1564
        %v1566 = vld [vmem:[%s4] sm:$0x1]
        %v1568 = vperm.slane %v1566, 0
        %v1570 = vadd.f32 %v1550, %v1568
        %v1571 = vadd.f32 %v1565, %v1568
        %1572 = vst.msk [vmem:[%s323] sm:$0xff] %vm389, %v1570
        %1573 = vst.msk [vmem:[%s323 + $0x8] sm:$0xff] %vm389, %v1571
        %s1574 = sand.u32 %s147, 1
        %s1575 = scalar_lea.sflag [#allocation4], %s1574
        %s1576 = sand.u32 %s147, 1
        %s1577 = smul.addr %s1576, 16
        %s1578 = scalar_lea.vmem [#allocation10], %s1577
        %s1579 = sand.u32 %s173, 1
        %s1580 = scalar_lea.sflag [#allocation12], %s1579
        %s1581 = sand.u32 %s173, 1
        %s1582 = smul.addr %s1581, 16
        %s1583 = scalar_lea.vmem [#allocation11], %s1582
        // Predicated region
        $region57: #{tpu_custom_call.1} parent=39 // pred_check
          %p1584 = pneg %p157
        $region58: #{tpu_custom_call.1} parent=39 // pred_check_branch
          %1586 = sbr.rel (%p1584) target = $region60
        $region59: #{tpu_custom_call.1} parent=39 // pred_region
          %1588 = vsyncadd %s1575, 0
          %s1589 = smul.addr %s29, 2
          %s1590 = smul.addr %s1589, 8
          %s1591 = scalar_lea.hbm %s5, %s1590
          %s1592 = sshll.u32 %s1578, 4
          %s1593 = int_to_ptr.vmem [resolvable:$true] %s1592
          %s1594 = sshll.u32 %s1591, 4
          %s1595 = int_to_ptr.hbm [resolvable:$true] %s1594
          %1600 = dma.vmem_to_hbm [thread:$0]  %s1593, 256, %s1595, %s1575, 128, 128, 8
        $region60: #{tpu_custom_call.1} parent=39 // pred_fallthru
          _
        // Predicated region
        $region61: #{tpu_custom_call.1} parent=39 // pred_check
          %p1601 = pneg %p183
        $region62: #{tpu_custom_call.1} parent=39 // pred_check_branch
          %1603 = sbr.rel (%p1601) target = $region64
        $region63: #{tpu_custom_call.1} parent=39 // pred_region
          %1605 = vsyncadd %s1580, 0
          %s1606 = smul.addr %s29, 2
          %s1607 = smul.addr %s1606, 8
          %s1608 = scalar_lea.hbm %s6, %s1607
          %s1609 = sshll.u32 %s1583, 4
          %s1610 = int_to_ptr.vmem [resolvable:$true] %s1609
          %s1611 = sshll.u32 %s1608, 4
          %s1612 = int_to_ptr.hbm [resolvable:$true] %s1611
          %1617 = dma.vmem_to_hbm [thread:$0]  %s1610, 256, %s1612, %s1580, 128, 128, 8
        $region64: #{tpu_custom_call.1} parent=39 // pred_fallthru
          _
      $region40: #{tpu_custom_call.1} parent=5 // pred_fallthru
        _
      %p1618 = scmp.le.s32.totalorder 2, %s24
      // Predicated region
      $region65: #{tpu_custom_call.1} parent=5 // pred_check
        %p1619 = pneg %p1618
      $region66: #{tpu_custom_call.1} parent=5 // pred_check_branch
        %1621 = sbr.rel (%p1619) target = $region68
      $region67: #{tpu_custom_call.1} parent=5 // pred_region
        %s1622 = ssub.s32 %s24, 2
        // Predicated region
        $region69: #{tpu_custom_call.1} parent=67 // pred_check
          %p1623 = pneg %p163
        $region70: #{tpu_custom_call.1} parent=67 // pred_check_branch
          %1625 = sbr.rel (%p1623) target = $region72
        $region71: #{tpu_custom_call.1} parent=67 // pred_region
          %s1626 = sand.u32 %s148, 1
          %s1627 = scalar_lea.sflag [#allocation4], %s1626
          %s1628 = sand.u32 %s148, 1
          %s1629 = smul.addr %s1628, 16
          %s1630 = scalar_lea.vmem [#allocation10], %s1629
          %1632 = dma.done %s1627, 256
        $region72: #{tpu_custom_call.1} parent=67 // pred_fallthru
          _
        // Predicated region
        $region73: #{tpu_custom_call.1} parent=67 // pred_check
          %p1633 = pneg %p189
        $region74: #{tpu_custom_call.1} parent=67 // pred_check_branch
          %1635 = sbr.rel (%p1633) target = $region76
        $region75: #{tpu_custom_call.1} parent=67 // pred_region
          %s1636 = sand.u32 %s174, 1
          %s1637 = scalar_lea.sflag [#allocation12], %s1636
          %s1638 = sand.u32 %s174, 1
          %s1639 = smul.addr %s1638, 16
          %s1640 = scalar_lea.vmem [#allocation11], %s1639
          %1642 = dma.done %s1637, 256
        $region76: #{tpu_custom_call.1} parent=67 // pred_fallthru
          _
      $region68: #{tpu_custom_call.1} parent=5 // pred_fallthru
        _
    $region6: #{tpu_custom_call.1} parent=1 // loop_footer
      %s28 = sadd.s32 1, %s24
    $region7: #{tpu_custom_call.1} parent=1 // loop_footer_branch
      %23 = sbr.rel target = $region3
    $region8: #{tpu_custom_call.1} parent=1 // loop_exit
      _
    %1643 = vsyncpa [#allocation3], 1
    %s1644 = scalar_lea.sflag [#allocation3], 1
    %1645 = vsyncpa %s1644, 1
    %1646 = vsyncpa [#allocation6], 1
    %1647 = vsyncpa [#allocation9], 1
    %1648 = vsyncpa [#allocation4], 1
    %s1649 = scalar_lea.sflag [#allocation4], 1
    %1650 = vsyncpa %s1649, 1
    %1651 = vsyncpa [#allocation12], 1
    %s1652 = scalar_lea.sflag [#allocation12], 1
    %1653 = vsyncpa %s1652, 1

</llo_original>
